<compile_context>
chip_gen: v7x
topology: tpu7x:2x2x1
jax: 0.10.0
libtpu: 0.0.40
codegen_flags: <defaults>
</compile_context>

<pallas_src>
import jax
import jax.numpy as jnp
from jax.experimental import pallas as pl
from jax.experimental.pallas import tpu as pltpu


# ---------------------------------------------------------------------------
# Path 1: small ensembles — everything resident in VMEM, single invocation.
# ---------------------------------------------------------------------------
def _fused_kernel(x_ref, w_ref, bsum_ref, o_ref):
    """x_ref: (B, D) bf16; w_ref: (M, D, K) bf16; bsum_ref: (1, K) f32;
    o_ref: (B, K) f32."""
    num_members = w_ref.shape[0]
    x = x_ref[...]
    acc = jnp.zeros(o_ref.shape, jnp.float32)
    for m in range(num_members):  # static unroll; M is small on this path
        acc = acc + jnp.dot(x, w_ref[m], preferred_element_type=jnp.float32)
    o_ref[...] = ((acc + bsum_ref[...]) * (1.0 / num_members)).astype(o_ref.dtype)


def _ensemble_fused(x2d, w, b_sum):
    B, _ = x2d.shape
    K = w.shape[2]
    vmem = pl.BlockSpec(memory_space=pltpu.MemorySpace.VMEM)
    return pl.pallas_call(
        _fused_kernel,
        out_shape=jax.ShapeDtypeStruct((B, K), jnp.float32),
        in_specs=[vmem, vmem, vmem],
        out_specs=vmem,
    )(x2d, w, b_sum)


# ---------------------------------------------------------------------------
# Path 2: large ensembles — (K tiles, M) grid, member axis is the reduction.
# ---------------------------------------------------------------------------
def _grid_kernel(x_ref, w_ref, bsum_ref, o_ref, acc_ref):
    """Grid = (K//tk, M). One step = one member's (D, tk) weight tile.

    x_ref:    (B, D)  bf16  same every step
    w_ref:    (D, tk) bf16  member m's K-tile (member axis squeezed)
    bsum_ref: (1, tk) f32   pre-summed biases for this K-tile
    o_ref:    (B, tk) f32   averaged logits (written on last member step)
    acc_ref:  (B, tk) f32   running sum over members (VMEM scratch)
    """
    m = pl.program_id(1)

    @pl.when(m == 0)
    def _():
        acc_ref[...] = jnp.zeros_like(acc_ref)

    acc_ref[...] += jnp.dot(
        x_ref[...], w_ref[...], preferred_element_type=jnp.float32
    )

    @pl.when(m == pl.num_programs(1) - 1)
    def _():
        inv_m = 1.0 / pl.num_programs(1)
        o_ref[...] = ((acc_ref[...] + bsum_ref[...]) * inv_m).astype(o_ref.dtype)


def _weight_spec(D, tk):
    index_map = lambda j, m: (m, 0, j)
    try:
        # Triple-buffer the weight stream: compute per step is tiny, so the
        # pipeline is back-to-back weight DMAs; a 3rd buffer hides ramp
        # bubbles between grid steps.
        return pl.BlockSpec((None, D, tk), index_map,
                            pipeline_mode=pl.Buffered(3))
    except TypeError:  # older Pallas without pipeline_mode / Buffered
        return pl.BlockSpec((None, D, tk), index_map)


def _ensemble_grid(x2d, w, b_sum, *, tk):
    B, D = x2d.shape
    M, _, K = w.shape
    assert K % tk == 0 and (tk % 128 == 0 or tk == K)
    return pl.pallas_call(
        _grid_kernel,
        out_shape=jax.ShapeDtypeStruct((B, K), jnp.float32),
        grid_spec=pltpu.PrefetchScalarGridSpec(
            num_scalar_prefetch=0,
            grid=(K // tk, M),                                  # reduction last
            in_specs=[
                pl.BlockSpec((B, D), lambda j, m: (0, 0)),      # x (constant)
                _weight_spec(D, tk),                            # W_m K-tile
                pl.BlockSpec((1, tk), lambda j, m: (0, j)),     # summed bias
            ],
            out_specs=pl.BlockSpec((B, tk), lambda j, m: (0, j)),
            scratch_shapes=[pltpu.VMEM((B, tk), jnp.float32)],
        ),
        compiler_params=pltpu.CompilerParams(
            # Independent K tiles -> shard across both v7x TensorCores.
            dimension_semantics=("parallel", "arbitrary"),
            # Above v5e's 16 MiB default scoped VMEM, within v7x's 64 MiB.
            vmem_limit_bytes=48 * 1024 * 1024,
        ),
    )(x2d, w, b_sum)


# ---------------------------------------------------------------------------
# Public wrapper.
# ---------------------------------------------------------------------------
def ensemble_forward(x_nchw, weights, biases, *, tk=None,
                     fused_weight_bytes=4 * 1024 * 1024):
    """x_nchw: (B, C, H, W); weights: (M, D, K); biases: (M, 1, K).

    Returns mean_m(flatten(x) @ W_m + b_m) as float32 of shape (B, K).
    """
    B = x_nchw.shape[0]
    M, D, K = weights.shape
    # Row-major flatten: identical element order to torch.flatten(x, 1).
    x2d = x_nchw.reshape(B, D).astype(jnp.bfloat16)
    # bf16 weight stream (HBM-bound path); MXU accumulates in f32.
    w = weights.astype(jnp.bfloat16)
    # Fold all biases into one f32 vector added once at the end.
    b_sum = jnp.sum(biases.astype(jnp.float32), axis=0).reshape(1, K)

    if tk is None and M * D * K * 2 <= fused_weight_bytes and M <= 8:
        return _ensemble_fused(x2d, w, b_sum)
    if tk is None:
        tk = K if K <= 256 else 256
    return _ensemble_grid(x2d, w, b_sum, tk=tk)


if __name__ == "__main__":
    # Small, deterministic synthetic setup.
    B, C, H, W = 2, 4, 16, 16      # NCHW input, as in PyTorch
    M = 3                          # number of ensemble members
    K = 256                        # number of classes (lane-dense, 2 K-tiles)
    D = C * H * W                  # 1024 flattened features

    key = jax.random.PRNGKey(0)
    kx, kw, kb = jax.random.split(key, 3)
    x = jax.random.normal(kx, (B, C, H, W), dtype=jnp.float32)
    weights = jax.random.normal(kw, (M, D, K), dtype=jnp.float32) * 0.02
    biases = jax.random.normal(kb, (M, 1, K), dtype=jnp.float32) * 0.1

    # Exercise both code paths on the same inputs.
    out_fused = jax.block_until_ready(ensemble_forward(x, weights, biases))
    out_grid = jax.block_until_ready(ensemble_forward(x, weights, biases, tk=128))

    # Plain-JAX f32 reference of the exact Ensemble semantics:
    # stack per-member outputs, mean over the member axis.
    x2d = x.reshape(B, D)
    ref = jnp.mean(
        jnp.stack([x2d @ weights[m] + biases[m] for m in range(M)]), axis=0
    )

    assert out_fused.shape == (B, K) and out_grid.shape == (B, K)
    # bf16 weight/activation streaming -> allow ~1e-2-level divergence vs f32.
    assert jnp.allclose(out_fused, ref, atol=2e-2, rtol=2e-2)
    assert jnp.allclose(out_grid, ref, atol=2e-2, rtol=2e-2)
    # The two kernel paths must agree closely with each other.
    assert jnp.allclose(out_fused, out_grid, atol=1e-3, rtol=1e-3)
    print("KERNEL_OK")
</pallas_src>

<mosaic_0001>
module attributes {stable_mosaic.version = 11 : i64} {
  func.func @_fused_kernel(%arg0: memref<2x1024xbf16, #tpu.memory_space<vmem>>, %arg1: memref<3x1024x256xbf16, #tpu.memory_space<vmem>>, %arg2: memref<1x256xf32, #tpu.memory_space<vmem>>, %arg3: memref<2x256xf32, #tpu.memory_space<vmem>>) attributes {dimension_semantics = [], scalar_prefetch = 0 : i64, scratch_operands = 0 : i64, tpu.core_type = #tpu.core_type<tc>} {
    %c0 = arith.constant 0 : index
    %c0_0 = arith.constant 0 : index
    %0 = vector.load %arg0[%c0, %c0_0] : memref<2x1024xbf16, #tpu.memory_space<vmem>>, vector<2x1024xbf16>
    %cst = arith.constant 0.000000e+00 : f32
    %1 = vector.broadcast %cst : f32 to vector<2x256xf32>
    %c0_1 = arith.constant 0 : index
    %c0_2 = arith.constant 0 : index
    %c0_3 = arith.constant 0 : index
    %2 = vector.load %arg1[%c0_1, %c0_2, %c0_3] : memref<3x1024x256xbf16, #tpu.memory_space<vmem>>, vector<1x1024x256xbf16>
    %3 = vector.shape_cast %2 : vector<1x1024x256xbf16> to vector<1024x256xbf16>
    %cst_4 = arith.constant dense<0.000000e+00> : vector<2x256xf32>
    %4 = tpu.matmul %0, %3, %cst_4 {dimension_numbers = #tpu.dot_dimension_numbers<[1], [0], [0], [1], [0, 0, 1, 1], [], []>} : vector<2x1024xbf16>, vector<1024x256xbf16>, vector<2x256xf32> -> vector<2x256xf32>
    %5 = arith.addf %1, %4 : vector<2x256xf32>
    %c1 = arith.constant 1 : index
    %c0_5 = arith.constant 0 : index
    %c0_6 = arith.constant 0 : index
    %6 = vector.load %arg1[%c1, %c0_5, %c0_6] : memref<3x1024x256xbf16, #tpu.memory_space<vmem>>, vector<1x1024x256xbf16>
    %7 = vector.shape_cast %6 : vector<1x1024x256xbf16> to vector<1024x256xbf16>
    %cst_7 = arith.constant dense<0.000000e+00> : vector<2x256xf32>
    %8 = tpu.matmul %0, %7, %cst_7 {dimension_numbers = #tpu.dot_dimension_numbers<[1], [0], [0], [1], [0, 0, 1, 1], [], []>} : vector<2x1024xbf16>, vector<1024x256xbf16>, vector<2x256xf32> -> vector<2x256xf32>
    %9 = arith.addf %5, %8 : vector<2x256xf32>
    %c2 = arith.constant 2 : index
    %c0_8 = arith.constant 0 : index
    %c0_9 = arith.constant 0 : index
    %10 = vector.load %arg1[%c2, %c0_8, %c0_9] : memref<3x1024x256xbf16, #tpu.memory_space<vmem>>, vector<1x1024x256xbf16>
    %11 = vector.shape_cast %10 : vector<1x1024x256xbf16> to vector<1024x256xbf16>
    %cst_10 = arith.constant dense<0.000000e+00> : vector<2x256xf32>
    %12 = tpu.matmul %0, %11, %cst_10 {dimension_numbers = #tpu.dot_dimension_numbers<[1], [0], [0], [1], [0, 0, 1, 1], [], []>} : vector<2x1024xbf16>, vector<1024x256xbf16>, vector<2x256xf32> -> vector<2x256xf32>
    %13 = arith.addf %9, %12 : vector<2x256xf32>
    %c0_11 = arith.constant 0 : index
    %c0_12 = arith.constant 0 : index
    %14 = vector.load %arg2[%c0_11, %c0_12] : memref<1x256xf32, #tpu.memory_space<vmem>>, vector<1x256xf32>
    %15 = vector.broadcast %14 : vector<1x256xf32> to vector<2x256xf32>
    %16 = arith.addf %13, %15 : vector<2x256xf32>
    %cst_13 = arith.constant 0.333333343 : f32
    %17 = vector.broadcast %cst_13 : f32 to vector<2x256xf32>
    %18 = arith.mulf %16, %17 : vector<2x256xf32>
    %c0_14 = arith.constant 0 : index
    %c0_15 = arith.constant 0 : index
    %19 = vector.load %arg3[%c0_14, %c0_15] : memref<2x256xf32, #tpu.memory_space<vmem>>, vector<2x256xf32>
    tpu.vector_store %arg3[%c0_14, %c0_15], %18 {strides = array<i32>} : memref<2x256xf32, #tpu.memory_space<vmem>>, vector<2x256xf32>,
    return
  }
}

</mosaic_0001>

<llo_original>
// kernel: tpu_custom_call.1
$region0: #{tpu_custom_call.1}
  #allocation0 [shape = 'u32[]', space=smem, size = 0x4, offset = 0x4, fixed_abs, tag = 'smem constant byte address 0x4 - core index']
  #allocation1 [shape = 'u32[144,128]{1,0:T(1,128)}', space=vmem, size = 0x12000, scoped, tag = 'internal scratch']
  %s0 = inlined_call_operand.hbm [shape: bf16[2,1024], index: 0, kind: input, shape index: {}]
  %s1 = inlined_call_operand.hbm [shape: bf16[3,1024,256], index: 1, kind: input, shape index: {}]
  %s2 = inlined_call_operand.hbm [shape: f32[1,256], index: 2, kind: input, shape index: {}]
  %s3 = inlined_call_operand.hbm [shape: f32[2,256], index: 3, kind: output, shape index: {}]
  %s4 = sld [smem:[#allocation0]]
  $region34: #{tpu_custom_call.1} parent=0
    _
  %s6 = ssub.s32 1, %s4
  %s7 = scalar_select 0, %s6, %s4
  $region1: #{tpu_custom_call.1} parent=0
    #allocation2 [shape = 'u8[4096]{0}', space=vmem, size = 0x1000, scoped, tag = 'input window, operand 0, single buffered']
    #allocation3 [shape = 's32[1]{0}', space=sflag, size = 0x4, scoped, tag = 'scoped memory for tpu_custom_call.1']
    #allocation4 [shape = 's32[1]{0}', space=sflag, size = 0x4, scoped, tag = 'scoped memory for tpu_custom_call.1']
    #allocation5 [shape = 'u8[1572864]{0}', space=vmem, size = 0x180000, scoped, tag = 'input window, operand 1, single buffered']
    #allocation6 [shape = 's32[1]{0}', space=sflag, size = 0x4, scoped, tag = 'scoped memory for tpu_custom_call.1']
    #allocation7 [shape = 'u8[1024]{0}', space=vmem, size = 0x400, scoped, tag = 'input window, operand 2, single buffered']
    #allocation8 [shape = 'u8[2048]{0}', space=vmem, size = 0x800, scoped, tag = 'output window, operand 0, single buffered']
    %8 = vsyncpa [#allocation3], 0
    %9 = vsyncpa [#allocation6], 0
    %10 = vsyncpa [#allocation4], 0
    // Predicated region
    $region2: #{tpu_custom_call.1} parent=1 // pred_check
      _
    $region3: #{tpu_custom_call.1} parent=1 // pred_check_branch
      %12 = sbr.rel (0) target = $region5
    $region4: #{tpu_custom_call.1} parent=1 // pred_region
      %s14 = ssub.s32 128, 128
      %15 = vsyncadd [#allocation3], %s14
      %s17 = sshll.u32 [#allocation2], 4
      %s18 = int_to_ptr.vmem [resolvable:$true] %s17
      %20 = dma.hbm_to_vmem [thread:$0]  %s0, 128, %s18, [#allocation3]
    $region5: #{tpu_custom_call.1} parent=1 // pred_fallthru
      _
    // Predicated region
    $region6: #{tpu_custom_call.1} parent=1 // pred_check
      _
    $region7: #{tpu_custom_call.1} parent=1 // pred_check_branch
      %22 = sbr.rel (0) target = $region9
    $region8: #{tpu_custom_call.1} parent=1 // pred_region
      %s24 = ssub.s32 49152, 49152
      %25 = vsyncadd [#allocation6], %s24
      %s26 = sshll.u32 [#allocation5], 4
      %s27 = int_to_ptr.vmem [resolvable:$true] %s26
      %32 = dma.hbm_to_vmem [thread:$0]  %s1, 49152, %s27, [#allocation6], 128, 128, 8
    $region9: #{tpu_custom_call.1} parent=1 // pred_fallthru
      _
    // Predicated region
    $region10: #{tpu_custom_call.1} parent=1 // pred_check
      _
    $region11: #{tpu_custom_call.1} parent=1 // pred_check_branch
      %34 = sbr.rel (0) target = $region13
    $region12: #{tpu_custom_call.1} parent=1 // pred_region
      %s36 = ssub.s32 32, 32
      %37 = vsyncadd [#allocation6], %s36
      %s39 = sshll.u32 [#allocation7], 4
      %s40 = int_to_ptr.vmem [resolvable:$true] %s39
      %42 = dma.hbm_to_vmem [thread:$0]  %s2, 32, %s40, [#allocation6]
    $region13: #{tpu_custom_call.1} parent=1 // pred_fallthru
      _
    // Predicated region
    $region14: #{tpu_custom_call.1} parent=1 // pred_check
      _
    $region15: #{tpu_custom_call.1} parent=1 // pred_check_branch
      %44 = sbr.rel (0) target = $region17
    $region16: #{tpu_custom_call.1} parent=1 // pred_region
      %45 = dma.done [#allocation3], 128
    $region17: #{tpu_custom_call.1} parent=1 // pred_fallthru
      _
    // Predicated region
    $region18: #{tpu_custom_call.1} parent=1 // pred_check
      _
    $region19: #{tpu_custom_call.1} parent=1 // pred_check_branch
      %47 = sbr.rel (0) target = $region21
    $region20: #{tpu_custom_call.1} parent=1 // pred_region
      %48 = dma.done [#allocation6], 49152
    $region21: #{tpu_custom_call.1} parent=1 // pred_fallthru
      _
    // Predicated region
    $region22: #{tpu_custom_call.1} parent=1 // pred_check
      _
    $region23: #{tpu_custom_call.1} parent=1 // pred_check_branch
      %50 = sbr.rel (0) target = $region25
    $region24: #{tpu_custom_call.1} parent=1 // pred_region
      %51 = dma.done [#allocation6], 32
    $region25: #{tpu_custom_call.1} parent=1 // pred_fallthru
      _
    %v52 = vld [vmem:[#allocation2] sm:$0xff]
    %v53 = vld [vmem:[#allocation5] sm:$0xff]
    %v54 = vld [vmem:[#allocation5 + $0x8] sm:$0xff]
    %v55 = vld [vmem:[#allocation5 + $0x10] sm:$0xff]
    %v56 = vld [vmem:[#allocation5 + $0x18] sm:$0xff]
    %v57 = vld [vmem:[#allocation5 + $0x20] sm:$0xff]
    %v58 = vld [vmem:[#allocation5 + $0x28] sm:$0xff]
    %v59 = vld [vmem:[#allocation5 + $0x30] sm:$0xff]
    %v60 = vld [vmem:[#allocation5 + $0x38] sm:$0xff]
    %v61 = vld [vmem:[#allocation5 + $0x40] sm:$0xff]
    %v62 = vld [vmem:[#allocation5 + $0x48] sm:$0xff]
    %v63 = vld [vmem:[#allocation5 + $0x50] sm:$0xff]
    %v64 = vld [vmem:[#allocation5 + $0x58] sm:$0xff]
    %v65 = vld [vmem:[#allocation5 + $0x60] sm:$0xff]
    %v66 = vld [vmem:[#allocation5 + $0x68] sm:$0xff]
    %v67 = vld [vmem:[#allocation5 + $0x70] sm:$0xff]
    %v68 = vld [vmem:[#allocation5 + $0x78] sm:$0xff]
    %v69 = vld [vmem:[#allocation5 + $0x80] sm:$0xff]
    %v70 = vld [vmem:[#allocation5 + $0x88] sm:$0xff]
    %v71 = vld [vmem:[#allocation5 + $0x90] sm:$0xff]
    %v72 = vld [vmem:[#allocation5 + $0x98] sm:$0xff]
    %v73 = vld [vmem:[#allocation5 + $0xa0] sm:$0xff]
    %v74 = vld [vmem:[#allocation5 + $0xa8] sm:$0xff]
    %v75 = vld [vmem:[#allocation5 + $0xb0] sm:$0xff]
    %v76 = vld [vmem:[#allocation5 + $0xb8] sm:$0xff]
    %v77 = vld [vmem:[#allocation5 + $0xc0] sm:$0xff]
    %v78 = vld [vmem:[#allocation5 + $0xc8] sm:$0xff]
    %v79 = vld [vmem:[#allocation5 + $0xd0] sm:$0xff]
    %v80 = vld [vmem:[#allocation5 + $0xd8] sm:$0xff]
    %v81 = vld [vmem:[#allocation5 + $0xe0] sm:$0xff]
    %v82 = vld [vmem:[#allocation5 + $0xe8] sm:$0xff]
    %v83 = vld [vmem:[#allocation5 + $0xf0] sm:$0xff]
    %v84 = vld [vmem:[#allocation5 + $0xf8] sm:$0xff]
    %v85 = vld [vmem:[#allocation5 + $0x100] sm:$0xff]
    %v86 = vld [vmem:[#allocation5 + $0x108] sm:$0xff]
    %v87 = vld [vmem:[#allocation5 + $0x110] sm:$0xff]
    %v88 = vld [vmem:[#allocation5 + $0x118] sm:$0xff]
    %v89 = vld [vmem:[#allocation5 + $0x120] sm:$0xff]
    %v90 = vld [vmem:[#allocation5 + $0x128] sm:$0xff]
    %v91 = vld [vmem:[#allocation5 + $0x130] sm:$0xff]
    %v92 = vld [vmem:[#allocation5 + $0x138] sm:$0xff]
    %v93 = vld [vmem:[#allocation5 + $0x140] sm:$0xff]
    %v94 = vld [vmem:[#allocation5 + $0x148] sm:$0xff]
    %v95 = vld [vmem:[#allocation5 + $0x150] sm:$0xff]
    %v96 = vld [vmem:[#allocation5 + $0x158] sm:$0xff]
    %v97 = vld [vmem:[#allocation5 + $0x160] sm:$0xff]
    %v98 = vld [vmem:[#allocation5 + $0x168] sm:$0xff]
    %v99 = vld [vmem:[#allocation5 + $0x170] sm:$0xff]
    %v100 = vld [vmem:[#allocation5 + $0x178] sm:$0xff]
    %v101 = vld [vmem:[#allocation5 + $0x180] sm:$0xff]
    %v102 = vld [vmem:[#allocation5 + $0x188] sm:$0xff]
    %v103 = vld [vmem:[#allocation5 + $0x190] sm:$0xff]
    %v104 = vld [vmem:[#allocation5 + $0x198] sm:$0xff]
    %v105 = vld [vmem:[#allocation5 + $0x1a0] sm:$0xff]
    %v106 = vld [vmem:[#allocation5 + $0x1a8] sm:$0xff]
    %v107 = vld [vmem:[#allocation5 + $0x1b0] sm:$0xff]
    %v108 = vld [vmem:[#allocation5 + $0x1b8] sm:$0xff]
    %v109 = vld [vmem:[#allocation5 + $0x1c0] sm:$0xff]
    %v110 = vld [vmem:[#allocation5 + $0x1c8] sm:$0xff]
    %v111 = vld [vmem:[#allocation5 + $0x1d0] sm:$0xff]
    %v112 = vld [vmem:[#allocation5 + $0x1d8] sm:$0xff]
    %v113 = vld [vmem:[#allocation5 + $0x1e0] sm:$0xff]
    %v114 = vld [vmem:[#allocation5 + $0x1e8] sm:$0xff]
    %v115 = vld [vmem:[#allocation5 + $0x1f0] sm:$0xff]
    %v116 = vld [vmem:[#allocation5 + $0x1f8] sm:$0xff]
    %v117 = vld [vmem:[#allocation5 + $0x200] sm:$0xff]
    %v118 = vld [vmem:[#allocation5 + $0x208] sm:$0xff]
    %v119 = vld [vmem:[#allocation5 + $0x210] sm:$0xff]
    %v120 = vld [vmem:[#allocation5 + $0x218] sm:$0xff]
    %v121 = vld [vmem:[#allocation5 + $0x220] sm:$0xff]
    %v122 = vld [vmem:[#allocation5 + $0x228] sm:$0xff]
    %v123 = vld [vmem:[#allocation5 + $0x230] sm:$0xff]
    %v124 = vld [vmem:[#allocation5 + $0x238] sm:$0xff]
    %v125 = vld [vmem:[#allocation5 + $0x240] sm:$0xff]
    %v126 = vld [vmem:[#allocation5 + $0x248] sm:$0xff]
    %v127 = vld [vmem:[#allocation5 + $0x250] sm:$0xff]
    %v128 = vld [vmem:[#allocation5 + $0x258] sm:$0xff]
    %v129 = vld [vmem:[#allocation5 + $0x260] sm:$0xff]
    %v130 = vld [vmem:[#allocation5 + $0x268] sm:$0xff]
    %v131 = vld [vmem:[#allocation5 + $0x270] sm:$0xff]
    %v132 = vld [vmem:[#allocation5 + $0x278] sm:$0xff]
    %v133 = vld [vmem:[#allocation5 + $0x280] sm:$0xff]
    %v134 = vld [vmem:[#allocation5 + $0x288] sm:$0xff]
    %v135 = vld [vmem:[#allocation5 + $0x290] sm:$0xff]
    %v136 = vld [vmem:[#allocation5 + $0x298] sm:$0xff]
    %v137 = vld [vmem:[#allocation5 + $0x2a0] sm:$0xff]
    %v138 = vld [vmem:[#allocation5 + $0x2a8] sm:$0xff]
    %v139 = vld [vmem:[#allocation5 + $0x2b0] sm:$0xff]
    %v140 = vld [vmem:[#allocation5 + $0x2b8] sm:$0xff]
    %v141 = vld [vmem:[#allocation5 + $0x2c0] sm:$0xff]
    %v142 = vld [vmem:[#allocation5 + $0x2c8] sm:$0xff]
    %v143 = vld [vmem:[#allocation5 + $0x2d0] sm:$0xff]
    %v144 = vld [vmem:[#allocation5 + $0x2d8] sm:$0xff]
    %v145 = vld [vmem:[#allocation5 + $0x2e0] sm:$0xff]
    %v146 = vld [vmem:[#allocation5 + $0x2e8] sm:$0xff]
    %v147 = vld [vmem:[#allocation5 + $0x2f0] sm:$0xff]
    %v148 = vld [vmem:[#allocation5 + $0x2f8] sm:$0xff]
    %v149 = vld [vmem:[#allocation5 + $0x300] sm:$0xff]
    %v150 = vld [vmem:[#allocation5 + $0x308] sm:$0xff]
    %v151 = vld [vmem:[#allocation5 + $0x310] sm:$0xff]
    %v152 = vld [vmem:[#allocation5 + $0x318] sm:$0xff]
    %v153 = vld [vmem:[#allocation5 + $0x320] sm:$0xff]
    %v154 = vld [vmem:[#allocation5 + $0x328] sm:$0xff]
    %v155 = vld [vmem:[#allocation5 + $0x330] sm:$0xff]
    %v156 = vld [vmem:[#allocation5 + $0x338] sm:$0xff]
    %v157 = vld [vmem:[#allocation5 + $0x340] sm:$0xff]
    %v158 = vld [vmem:[#allocation5 + $0x348] sm:$0xff]
    %v159 = vld [vmem:[#allocation5 + $0x350] sm:$0xff]
    %v160 = vld [vmem:[#allocation5 + $0x358] sm:$0xff]
    %v161 = vld [vmem:[#allocation5 + $0x360] sm:$0xff]
    %v162 = vld [vmem:[#allocation5 + $0x368] sm:$0xff]
    %v163 = vld [vmem:[#allocation5 + $0x370] sm:$0xff]
    %v164 = vld [vmem:[#allocation5 + $0x378] sm:$0xff]
    %v165 = vld [vmem:[#allocation5 + $0x380] sm:$0xff]
    %v166 = vld [vmem:[#allocation5 + $0x388] sm:$0xff]
    %v167 = vld [vmem:[#allocation5 + $0x390] sm:$0xff]
    %v168 = vld [vmem:[#allocation5 + $0x398] sm:$0xff]
    %v169 = vld [vmem:[#allocation5 + $0x3a0] sm:$0xff]
    %v170 = vld [vmem:[#allocation5 + $0x3a8] sm:$0xff]
    %v171 = vld [vmem:[#allocation5 + $0x3b0] sm:$0xff]
    %v172 = vld [vmem:[#allocation5 + $0x3b8] sm:$0xff]
    %v173 = vld [vmem:[#allocation5 + $0x3c0] sm:$0xff]
    %v174 = vld [vmem:[#allocation5 + $0x3c8] sm:$0xff]
    %v175 = vld [vmem:[#allocation5 + $0x3d0] sm:$0xff]
    %v176 = vld [vmem:[#allocation5 + $0x3d8] sm:$0xff]
    %v177 = vld [vmem:[#allocation5 + $0x3e0] sm:$0xff]
    %v178 = vld [vmem:[#allocation5 + $0x3e8] sm:$0xff]
    %v179 = vld [vmem:[#allocation5 + $0x3f0] sm:$0xff]
    %v180 = vld [vmem:[#allocation5 + $0x3f8] sm:$0xff]
    %s181 = scalar_lea.vmem [#allocation5], 1024
    %v182 = vld [vmem:[%s181] sm:$0xff]
    %v183 = vld [vmem:[%s181 + $0x8] sm:$0xff]
    %v184 = vld [vmem:[%s181 + $0x10] sm:$0xff]
    %v185 = vld [vmem:[%s181 + $0x18] sm:$0xff]
    %v186 = vld [vmem:[%s181 + $0x20] sm:$0xff]
    %v187 = vld [vmem:[%s181 + $0x28] sm:$0xff]
    %v188 = vld [vmem:[%s181 + $0x30] sm:$0xff]
    %v189 = vld [vmem:[%s181 + $0x38] sm:$0xff]
    %v190 = vld [vmem:[%s181 + $0x40] sm:$0xff]
    %v191 = vld [vmem:[%s181 + $0x48] sm:$0xff]
    %v192 = vld [vmem:[%s181 + $0x50] sm:$0xff]
    %v193 = vld [vmem:[%s181 + $0x58] sm:$0xff]
    %v194 = vld [vmem:[%s181 + $0x60] sm:$0xff]
    %v195 = vld [vmem:[%s181 + $0x68] sm:$0xff]
    %v196 = vld [vmem:[%s181 + $0x70] sm:$0xff]
    %v197 = vld [vmem:[%s181 + $0x78] sm:$0xff]
    %v198 = vld [vmem:[%s181 + $0x80] sm:$0xff]
    %v199 = vld [vmem:[%s181 + $0x88] sm:$0xff]
    %v200 = vld [vmem:[%s181 + $0x90] sm:$0xff]
    %v201 = vld [vmem:[%s181 + $0x98] sm:$0xff]
    %v202 = vld [vmem:[%s181 + $0xa0] sm:$0xff]
    %v203 = vld [vmem:[%s181 + $0xa8] sm:$0xff]
    %v204 = vld [vmem:[%s181 + $0xb0] sm:$0xff]
    %v205 = vld [vmem:[%s181 + $0xb8] sm:$0xff]
    %v206 = vld [vmem:[%s181 + $0xc0] sm:$0xff]
    %v207 = vld [vmem:[%s181 + $0xc8] sm:$0xff]
    %v208 = vld [vmem:[%s181 + $0xd0] sm:$0xff]
    %v209 = vld [vmem:[%s181 + $0xd8] sm:$0xff]
    %v210 = vld [vmem:[%s181 + $0xe0] sm:$0xff]
    %v211 = vld [vmem:[%s181 + $0xe8] sm:$0xff]
    %v212 = vld [vmem:[%s181 + $0xf0] sm:$0xff]
    %v213 = vld [vmem:[%s181 + $0xf8] sm:$0xff]
    %v214 = vld [vmem:[%s181 + $0x100] sm:$0xff]
    %v215 = vld [vmem:[%s181 + $0x108] sm:$0xff]
    %v216 = vld [vmem:[%s181 + $0x110] sm:$0xff]
    %v217 = vld [vmem:[%s181 + $0x118] sm:$0xff]
    %v218 = vld [vmem:[%s181 + $0x120] sm:$0xff]
    %v219 = vld [vmem:[%s181 + $0x128] sm:$0xff]
    %v220 = vld [vmem:[%s181 + $0x130] sm:$0xff]
    %v221 = vld [vmem:[%s181 + $0x138] sm:$0xff]
    %v222 = vld [vmem:[%s181 + $0x140] sm:$0xff]
    %v223 = vld [vmem:[%s181 + $0x148] sm:$0xff]
    %v224 = vld [vmem:[%s181 + $0x150] sm:$0xff]
    %v225 = vld [vmem:[%s181 + $0x158] sm:$0xff]
    %v226 = vld [vmem:[%s181 + $0x160] sm:$0xff]
    %v227 = vld [vmem:[%s181 + $0x168] sm:$0xff]
    %v228 = vld [vmem:[%s181 + $0x170] sm:$0xff]
    %v229 = vld [vmem:[%s181 + $0x178] sm:$0xff]
    %v230 = vld [vmem:[%s181 + $0x180] sm:$0xff]
    %v231 = vld [vmem:[%s181 + $0x188] sm:$0xff]
    %v232 = vld [vmem:[%s181 + $0x190] sm:$0xff]
    %v233 = vld [vmem:[%s181 + $0x198] sm:$0xff]
    %v234 = vld [vmem:[%s181 + $0x1a0] sm:$0xff]
    %v235 = vld [vmem:[%s181 + $0x1a8] sm:$0xff]
    %v236 = vld [vmem:[%s181 + $0x1b0] sm:$0xff]
    %v237 = vld [vmem:[%s181 + $0x1b8] sm:$0xff]
    %v238 = vld [vmem:[%s181 + $0x1c0] sm:$0xff]
    %v239 = vld [vmem:[%s181 + $0x1c8] sm:$0xff]
    %v240 = vld [vmem:[%s181 + $0x1d0] sm:$0xff]
    %v241 = vld [vmem:[%s181 + $0x1d8] sm:$0xff]
    %v242 = vld [vmem:[%s181 + $0x1e0] sm:$0xff]
    %v243 = vld [vmem:[%s181 + $0x1e8] sm:$0xff]
    %v244 = vld [vmem:[%s181 + $0x1f0] sm:$0xff]
    %v245 = vld [vmem:[%s181 + $0x1f8] sm:$0xff]
    %v246 = vld [vmem:[%s181 + $0x200] sm:$0xff]
    %v247 = vld [vmem:[%s181 + $0x208] sm:$0xff]
    %v248 = vld [vmem:[%s181 + $0x210] sm:$0xff]
    %v249 = vld [vmem:[%s181 + $0x218] sm:$0xff]
    %v250 = vld [vmem:[%s181 + $0x220] sm:$0xff]
    %v251 = vld [vmem:[%s181 + $0x228] sm:$0xff]
    %v252 = vld [vmem:[%s181 + $0x230] sm:$0xff]
    %v253 = vld [vmem:[%s181 + $0x238] sm:$0xff]
    %v254 = vld [vmem:[%s181 + $0x240] sm:$0xff]
    %v255 = vld [vmem:[%s181 + $0x248] sm:$0xff]
    %v256 = vld [vmem:[%s181 + $0x250] sm:$0xff]
    %v257 = vld [vmem:[%s181 + $0x258] sm:$0xff]
    %v258 = vld [vmem:[%s181 + $0x260] sm:$0xff]
    %v259 = vld [vmem:[%s181 + $0x268] sm:$0xff]
    %v260 = vld [vmem:[%s181 + $0x270] sm:$0xff]
    %v261 = vld [vmem:[%s181 + $0x278] sm:$0xff]
    %v262 = vld [vmem:[%s181 + $0x280] sm:$0xff]
    %v263 = vld [vmem:[%s181 + $0x288] sm:$0xff]
    %v264 = vld [vmem:[%s181 + $0x290] sm:$0xff]
    %v265 = vld [vmem:[%s181 + $0x298] sm:$0xff]
    %v266 = vld [vmem:[%s181 + $0x2a0] sm:$0xff]
    %v267 = vld [vmem:[%s181 + $0x2a8] sm:$0xff]
    %v268 = vld [vmem:[%s181 + $0x2b0] sm:$0xff]
    %v269 = vld [vmem:[%s181 + $0x2b8] sm:$0xff]
    %v270 = vld [vmem:[%s181 + $0x2c0] sm:$0xff]
    %v271 = vld [vmem:[%s181 + $0x2c8] sm:$0xff]
    %v272 = vld [vmem:[%s181 + $0x2d0] sm:$0xff]
    %v273 = vld [vmem:[%s181 + $0x2d8] sm:$0xff]
    %v274 = vld [vmem:[%s181 + $0x2e0] sm:$0xff]
    %v275 = vld [vmem:[%s181 + $0x2e8] sm:$0xff]
    %v276 = vld [vmem:[%s181 + $0x2f0] sm:$0xff]
    %v277 = vld [vmem:[%s181 + $0x2f8] sm:$0xff]
    %v278 = vld [vmem:[%s181 + $0x300] sm:$0xff]
    %v279 = vld [vmem:[%s181 + $0x308] sm:$0xff]
    %v280 = vld [vmem:[%s181 + $0x310] sm:$0xff]
    %v281 = vld [vmem:[%s181 + $0x318] sm:$0xff]
    %v282 = vld [vmem:[%s181 + $0x320] sm:$0xff]
    %v283 = vld [vmem:[%s181 + $0x328] sm:$0xff]
    %v284 = vld [vmem:[%s181 + $0x330] sm:$0xff]
    %v285 = vld [vmem:[%s181 + $0x338] sm:$0xff]
    %v286 = vld [vmem:[%s181 + $0x340] sm:$0xff]
    %v287 = vld [vmem:[%s181 + $0x348] sm:$0xff]
    %v288 = vld [vmem:[%s181 + $0x350] sm:$0xff]
    %v289 = vld [vmem:[%s181 + $0x358] sm:$0xff]
    %v290 = vld [vmem:[%s181 + $0x360] sm:$0xff]
    %v291 = vld [vmem:[%s181 + $0x368] sm:$0xff]
    %v292 = vld [vmem:[%s181 + $0x370] sm:$0xff]
    %v293 = vld [vmem:[%s181 + $0x378] sm:$0xff]
    %v294 = vld [vmem:[%s181 + $0x380] sm:$0xff]
    %v295 = vld [vmem:[%s181 + $0x388] sm:$0xff]
    %v296 = vld [vmem:[%s181 + $0x390] sm:$0xff]
    %v297 = vld [vmem:[%s181 + $0x398] sm:$0xff]
    %v298 = vld [vmem:[%s181 + $0x3a0] sm:$0xff]
    %v299 = vld [vmem:[%s181 + $0x3a8] sm:$0xff]
    %v300 = vld [vmem:[%s181 + $0x3b0] sm:$0xff]
    %v301 = vld [vmem:[%s181 + $0x3b8] sm:$0xff]
    %v302 = vld [vmem:[%s181 + $0x3c0] sm:$0xff]
    %v303 = vld [vmem:[%s181 + $0x3c8] sm:$0xff]
    %v304 = vld [vmem:[%s181 + $0x3d0] sm:$0xff]
    %v305 = vld [vmem:[%s181 + $0x3d8] sm:$0xff]
    %v306 = vld [vmem:[%s181 + $0x3e0] sm:$0xff]
    %v307 = vld [vmem:[%s181 + $0x3e8] sm:$0xff]
    %v308 = vld [vmem:[%s181 + $0x3f0] sm:$0xff]
    %v309 = vld [vmem:[%s181 + $0x3f8] sm:$0xff]
    %v311 = vcombine.high %v52, %v52
    %v313 = vunpack.c.l.s4 1966171168
    %v314 = vunpack.c.0.s8 %v313
    %v315 = vlaneseq
    %v316 = vshrl.u32 %v315, 7
    %v317 = vsub.s32 %v314, %v316
    %v318 = vrot.slane %v52, %v317
    %v320 = vunpack.c.l.s4 1966171168
    %v321 = vunpack.c.0.s8 %v320
    %v322 = vlaneseq
    %v323 = vshrl.u32 %v322, 7
    %v324 = vsub.s32 %v321, %v323
    %v325 = vrot.slane %v311, %v324
    %v326 = vcombine.high %v318, %v318
    %v327 = vcombine.high %v325, %v325
    %v329 = vunpack.c.l.s4 1966171168
    %v330 = vunpack.c.0.s8 %v329
    %v331 = vlaneseq
    %v332 = vshrl.u32 %v331, 7
    %v333 = vsub.s32 %v330, %v332
    %v334 = vrot.slane %v318, %v333
    %v336 = vunpack.c.l.s4 1966171168
    %v337 = vunpack.c.0.s8 %v336
    %v338 = vlaneseq
    %v339 = vshrl.u32 %v338, 7
    %v340 = vsub.s32 %v337, %v339
    %v341 = vrot.slane %v325, %v340
    %v343 = vunpack.c.l.s4 1966171168
    %v344 = vunpack.c.0.s8 %v343
    %v345 = vlaneseq
    %v346 = vshrl.u32 %v345, 7
    %v347 = vsub.s32 %v344, %v346
    %v348 = vrot.slane %v326, %v347
    %v350 = vunpack.c.l.s4 1966171168
    %v351 = vunpack.c.0.s8 %v350
    %v352 = vlaneseq
    %v353 = vshrl.u32 %v352, 7
    %v354 = vsub.s32 %v351, %v353
    %v355 = vrot.slane %v327, %v354
    %v356 = vcombine.high %v334, %v334
    %v357 = vcombine.high %v341, %v341
    %v358 = vcombine.high %v348, %v348
    %v359 = vcombine.high %v355, %v355
    %v496 = vunpack.c.l.b16 %v182
    %v497 = vunpack.c.h.b16 %v182
    %v498 = vunpack.c.l.b16 %v183
    %v499 = vunpack.c.h.b16 %v183
    %v500 = vunpack.c.l.b16 %v184
    %v501 = vunpack.c.h.b16 %v184
    %v502 = vunpack.c.l.b16 %v185
    %v503 = vunpack.c.h.b16 %v185
    %v504 = vunpack.c.l.b16 %v186
    %v505 = vunpack.c.h.b16 %v186
    %v506 = vunpack.c.l.b16 %v187
    %v507 = vunpack.c.h.b16 %v187
    %v508 = vunpack.c.l.b16 %v188
    %v509 = vunpack.c.h.b16 %v188
    %v510 = vunpack.c.l.b16 %v189
    %v511 = vunpack.c.h.b16 %v189
    %v512 = vunpack.c.l.b16 %v190
    %v513 = vunpack.c.h.b16 %v190
    %v514 = vunpack.c.l.b16 %v191
    %v515 = vunpack.c.h.b16 %v191
    %v516 = vunpack.c.l.b16 %v192
    %v517 = vunpack.c.h.b16 %v192
    %v518 = vunpack.c.l.b16 %v193
    %v519 = vunpack.c.h.b16 %v193
    %v520 = vunpack.c.l.b16 %v194
    %v521 = vunpack.c.h.b16 %v194
    %v522 = vunpack.c.l.b16 %v195
    %v523 = vunpack.c.h.b16 %v195
    %v524 = vunpack.c.l.b16 %v196
    %v525 = vunpack.c.h.b16 %v196
    %v526 = vunpack.c.l.b16 %v197
    %v527 = vunpack.c.h.b16 %v197
    %v528 = vunpack.c.l.b16 %v198
    %v529 = vunpack.c.h.b16 %v198
    %v530 = vunpack.c.l.b16 %v199
    %v531 = vunpack.c.h.b16 %v199
    %v532 = vunpack.c.l.b16 %v200
    %v533 = vunpack.c.h.b16 %v200
    %v534 = vunpack.c.l.b16 %v201
    %v535 = vunpack.c.h.b16 %v201
    %v536 = vunpack.c.l.b16 %v202
    %v537 = vunpack.c.h.b16 %v202
    %v538 = vunpack.c.l.b16 %v203
    %v539 = vunpack.c.h.b16 %v203
    %v540 = vunpack.c.l.b16 %v204
    %v541 = vunpack.c.h.b16 %v204
    %v542 = vunpack.c.l.b16 %v205
    %v543 = vunpack.c.h.b16 %v205
    %v544 = vunpack.c.l.b16 %v206
    %v545 = vunpack.c.h.b16 %v206
    %v546 = vunpack.c.l.b16 %v207
    %v547 = vunpack.c.h.b16 %v207
    %v548 = vunpack.c.l.b16 %v208
    %v549 = vunpack.c.h.b16 %v208
    %v550 = vunpack.c.l.b16 %v209
    %v551 = vunpack.c.h.b16 %v209
    %v552 = vunpack.c.l.b16 %v210
    %v553 = vunpack.c.h.b16 %v210
    %v554 = vunpack.c.l.b16 %v211
    %v555 = vunpack.c.h.b16 %v211
    %v556 = vunpack.c.l.b16 %v212
    %v557 = vunpack.c.h.b16 %v212
    %v558 = vunpack.c.l.b16 %v213
    %v559 = vunpack.c.h.b16 %v213
    %v560 = vunpack.c.l.b16 %v214
    %v561 = vunpack.c.h.b16 %v214
    %v562 = vunpack.c.l.b16 %v215
    %v563 = vunpack.c.h.b16 %v215
    %v564 = vunpack.c.l.b16 %v216
    %v565 = vunpack.c.h.b16 %v216
    %v566 = vunpack.c.l.b16 %v217
    %v567 = vunpack.c.h.b16 %v217
    %v568 = vunpack.c.l.b16 %v218
    %v569 = vunpack.c.h.b16 %v218
    %v570 = vunpack.c.l.b16 %v219
    %v571 = vunpack.c.h.b16 %v219
    %v572 = vunpack.c.l.b16 %v220
    %v573 = vunpack.c.h.b16 %v220
    %v574 = vunpack.c.l.b16 %v221
    %v575 = vunpack.c.h.b16 %v221
    %v576 = vunpack.c.l.b16 %v222
    %v577 = vunpack.c.h.b16 %v222
    %v578 = vunpack.c.l.b16 %v223
    %v579 = vunpack.c.h.b16 %v223
    %v580 = vunpack.c.l.b16 %v224
    %v581 = vunpack.c.h.b16 %v224
    %v582 = vunpack.c.l.b16 %v225
    %v583 = vunpack.c.h.b16 %v225
    %v584 = vunpack.c.l.b16 %v226
    %v585 = vunpack.c.h.b16 %v226
    %v586 = vunpack.c.l.b16 %v227
    %v587 = vunpack.c.h.b16 %v227
    %v588 = vunpack.c.l.b16 %v228
    %v589 = vunpack.c.h.b16 %v228
    %v590 = vunpack.c.l.b16 %v229
    %v591 = vunpack.c.h.b16 %v229
    %v592 = vunpack.c.l.b16 %v230
    %v593 = vunpack.c.h.b16 %v230
    %v594 = vunpack.c.l.b16 %v231
    %v595 = vunpack.c.h.b16 %v231
    %v596 = vunpack.c.l.b16 %v232
    %v597 = vunpack.c.h.b16 %v232
    %v598 = vunpack.c.l.b16 %v233
    %v599 = vunpack.c.h.b16 %v233
    %v600 = vunpack.c.l.b16 %v234
    %v601 = vunpack.c.h.b16 %v234
    %v602 = vunpack.c.l.b16 %v235
    %v603 = vunpack.c.h.b16 %v235
    %v604 = vunpack.c.l.b16 %v236
    %v605 = vunpack.c.h.b16 %v236
    %v606 = vunpack.c.l.b16 %v237
    %v607 = vunpack.c.h.b16 %v237
    %v608 = vunpack.c.l.b16 %v238
    %v609 = vunpack.c.h.b16 %v238
    %v610 = vunpack.c.l.b16 %v239
    %v611 = vunpack.c.h.b16 %v239
    %v612 = vunpack.c.l.b16 %v240
    %v613 = vunpack.c.h.b16 %v240
    %v614 = vunpack.c.l.b16 %v241
    %v615 = vunpack.c.h.b16 %v241
    %v616 = vunpack.c.l.b16 %v242
    %v617 = vunpack.c.h.b16 %v242
    %v618 = vunpack.c.l.b16 %v243
    %v619 = vunpack.c.h.b16 %v243
    %v620 = vunpack.c.l.b16 %v244
    %v621 = vunpack.c.h.b16 %v244
    %v622 = vunpack.c.l.b16 %v245
    %v623 = vunpack.c.h.b16 %v245
    %v624 = vunpack.c.l.b16 %v246
    %v625 = vunpack.c.h.b16 %v246
    %v626 = vunpack.c.l.b16 %v247
    %v627 = vunpack.c.h.b16 %v247
    %v628 = vunpack.c.l.b16 %v248
    %v629 = vunpack.c.h.b16 %v248
    %v630 = vunpack.c.l.b16 %v249
    %v631 = vunpack.c.h.b16 %v249
    %v632 = vunpack.c.l.b16 %v250
    %v633 = vunpack.c.h.b16 %v250
    %v634 = vunpack.c.l.b16 %v251
    %v635 = vunpack.c.h.b16 %v251
    %v636 = vunpack.c.l.b16 %v252
    %v637 = vunpack.c.h.b16 %v252
    %v638 = vunpack.c.l.b16 %v253
    %v639 = vunpack.c.h.b16 %v253
    %v640 = vunpack.c.l.b16 %v254
    %v641 = vunpack.c.h.b16 %v254
    %v642 = vunpack.c.l.b16 %v255
    %v643 = vunpack.c.h.b16 %v255
    %v644 = vunpack.c.l.b16 %v256
    %v645 = vunpack.c.h.b16 %v256
    %v646 = vunpack.c.l.b16 %v257
    %v647 = vunpack.c.h.b16 %v257
    %v648 = vunpack.c.l.b16 %v258
    %v649 = vunpack.c.h.b16 %v258
    %v650 = vunpack.c.l.b16 %v259
    %v651 = vunpack.c.h.b16 %v259
    %v652 = vunpack.c.l.b16 %v260
    %v653 = vunpack.c.h.b16 %v260
    %v654 = vunpack.c.l.b16 %v261
    %v655 = vunpack.c.h.b16 %v261
    %v656 = vunpack.c.l.b16 %v262
    %v657 = vunpack.c.h.b16 %v262
    %v658 = vunpack.c.l.b16 %v263
    %v659 = vunpack.c.h.b16 %v263
    %v660 = vunpack.c.l.b16 %v264
    %v661 = vunpack.c.h.b16 %v264
    %v662 = vunpack.c.l.b16 %v265
    %v663 = vunpack.c.h.b16 %v265
    %v664 = vunpack.c.l.b16 %v266
    %v665 = vunpack.c.h.b16 %v266
    %v666 = vunpack.c.l.b16 %v267
    %v667 = vunpack.c.h.b16 %v267
    %v668 = vunpack.c.l.b16 %v268
    %v669 = vunpack.c.h.b16 %v268
    %v670 = vunpack.c.l.b16 %v269
    %v671 = vunpack.c.h.b16 %v269
    %v672 = vunpack.c.l.b16 %v270
    %v673 = vunpack.c.h.b16 %v270
    %v674 = vunpack.c.l.b16 %v271
    %v675 = vunpack.c.h.b16 %v271
    %v676 = vunpack.c.l.b16 %v272
    %v677 = vunpack.c.h.b16 %v272
    %v678 = vunpack.c.l.b16 %v273
    %v679 = vunpack.c.h.b16 %v273
    %v680 = vunpack.c.l.b16 %v274
    %v681 = vunpack.c.h.b16 %v274
    %v682 = vunpack.c.l.b16 %v275
    %v683 = vunpack.c.h.b16 %v275
    %v684 = vunpack.c.l.b16 %v276
    %v685 = vunpack.c.h.b16 %v276
    %v686 = vunpack.c.l.b16 %v277
    %v687 = vunpack.c.h.b16 %v277
    %v688 = vunpack.c.l.b16 %v278
    %v689 = vunpack.c.h.b16 %v278
    %v690 = vunpack.c.l.b16 %v279
    %v691 = vunpack.c.h.b16 %v279
    %v692 = vunpack.c.l.b16 %v280
    %v693 = vunpack.c.h.b16 %v280
    %v694 = vunpack.c.l.b16 %v281
    %v695 = vunpack.c.h.b16 %v281
    %v696 = vunpack.c.l.b16 %v282
    %v697 = vunpack.c.h.b16 %v282
    %v698 = vunpack.c.l.b16 %v283
    %v699 = vunpack.c.h.b16 %v283
    %v700 = vunpack.c.l.b16 %v284
    %v701 = vunpack.c.h.b16 %v284
    %v702 = vunpack.c.l.b16 %v285
    %v703 = vunpack.c.h.b16 %v285
    %v704 = vunpack.c.l.b16 %v286
    %v705 = vunpack.c.h.b16 %v286
    %v706 = vunpack.c.l.b16 %v287
    %v707 = vunpack.c.h.b16 %v287
    %v708 = vunpack.c.l.b16 %v288
    %v709 = vunpack.c.h.b16 %v288
    %v710 = vunpack.c.l.b16 %v289
    %v711 = vunpack.c.h.b16 %v289
    %v712 = vunpack.c.l.b16 %v290
    %v713 = vunpack.c.h.b16 %v290
    %v714 = vunpack.c.l.b16 %v291
    %v715 = vunpack.c.h.b16 %v291
    %v716 = vunpack.c.l.b16 %v292
    %v717 = vunpack.c.h.b16 %v292
    %v718 = vunpack.c.l.b16 %v293
    %v719 = vunpack.c.h.b16 %v293
    %v720 = vunpack.c.l.b16 %v294
    %v721 = vunpack.c.h.b16 %v294
    %v722 = vunpack.c.l.b16 %v295
    %v723 = vunpack.c.h.b16 %v295
    %v724 = vunpack.c.l.b16 %v296
    %v725 = vunpack.c.h.b16 %v296
    %v726 = vunpack.c.l.b16 %v297
    %v727 = vunpack.c.h.b16 %v297
    %v728 = vunpack.c.l.b16 %v298
    %v729 = vunpack.c.h.b16 %v298
    %v730 = vunpack.c.l.b16 %v299
    %v731 = vunpack.c.h.b16 %v299
    %v732 = vunpack.c.l.b16 %v300
    %v733 = vunpack.c.h.b16 %v300
    %v734 = vunpack.c.l.b16 %v301
    %v735 = vunpack.c.h.b16 %v301
    %v736 = vunpack.c.l.b16 %v302
    %v737 = vunpack.c.h.b16 %v302
    %v738 = vunpack.c.l.b16 %v303
    %v739 = vunpack.c.h.b16 %v303
    %v740 = vunpack.c.l.b16 %v304
    %v741 = vunpack.c.h.b16 %v304
    %v742 = vunpack.c.l.b16 %v305
    %v743 = vunpack.c.h.b16 %v305
    %v744 = vunpack.c.l.b16 %v306
    %v745 = vunpack.c.h.b16 %v306
    %v746 = vunpack.c.l.b16 %v307
    %v747 = vunpack.c.h.b16 %v307
    %v748 = vunpack.c.l.b16 %v308
    %v749 = vunpack.c.h.b16 %v308
    %v750 = vunpack.c.l.b16 %v309
    %v751 = vunpack.c.h.b16 %v309
    %v752 = vpack.c.b16 %v498, %v496
    %v753 = vpack.c.b16 %v499, %v497
    %v754 = vpack.c.b16 %v502, %v500
    %v755 = vpack.c.b16 %v503, %v501
    %v756 = vpack.c.b16 %v506, %v504
    %v757 = vpack.c.b16 %v507, %v505
    %v758 = vpack.c.b16 %v510, %v508
    %v759 = vpack.c.b16 %v511, %v509
    %v760 = vpack.c.b16 %v514, %v512
    %v761 = vpack.c.b16 %v515, %v513
    %v762 = vpack.c.b16 %v518, %v516
    %v763 = vpack.c.b16 %v519, %v517
    %v764 = vpack.c.b16 %v522, %v520
    %v765 = vpack.c.b16 %v523, %v521
    %v766 = vpack.c.b16 %v526, %v524
    %v767 = vpack.c.b16 %v527, %v525
    %v768 = vpack.c.b16 %v530, %v528
    %v769 = vpack.c.b16 %v531, %v529
    %v770 = vpack.c.b16 %v534, %v532
    %v771 = vpack.c.b16 %v535, %v533
    %v772 = vpack.c.b16 %v538, %v536
    %v773 = vpack.c.b16 %v539, %v537
    %v774 = vpack.c.b16 %v542, %v540
    %v775 = vpack.c.b16 %v543, %v541
    %v776 = vpack.c.b16 %v546, %v544
    %v777 = vpack.c.b16 %v547, %v545
    %v778 = vpack.c.b16 %v550, %v548
    %v779 = vpack.c.b16 %v551, %v549
    %v780 = vpack.c.b16 %v554, %v552
    %v781 = vpack.c.b16 %v555, %v553
    %v782 = vpack.c.b16 %v558, %v556
    %v783 = vpack.c.b16 %v559, %v557
    %v784 = vpack.c.b16 %v562, %v560
    %v785 = vpack.c.b16 %v563, %v561
    %v786 = vpack.c.b16 %v566, %v564
    %v787 = vpack.c.b16 %v567, %v565
    %v788 = vpack.c.b16 %v570, %v568
    %v789 = vpack.c.b16 %v571, %v569
    %v790 = vpack.c.b16 %v574, %v572
    %v791 = vpack.c.b16 %v575, %v573
    %v792 = vpack.c.b16 %v578, %v576
    %v793 = vpack.c.b16 %v579, %v577
    %v794 = vpack.c.b16 %v582, %v580
    %v795 = vpack.c.b16 %v583, %v581
    %v796 = vpack.c.b16 %v586, %v584
    %v797 = vpack.c.b16 %v587, %v585
    %v798 = vpack.c.b16 %v590, %v588
    %v799 = vpack.c.b16 %v591, %v589
    %v800 = vpack.c.b16 %v594, %v592
    %v801 = vpack.c.b16 %v595, %v593
    %v802 = vpack.c.b16 %v598, %v596
    %v803 = vpack.c.b16 %v599, %v597
    %v804 = vpack.c.b16 %v602, %v600
    %v805 = vpack.c.b16 %v603, %v601
    %v806 = vpack.c.b16 %v606, %v604
    %v807 = vpack.c.b16 %v607, %v605
    %v808 = vpack.c.b16 %v610, %v608
    %v809 = vpack.c.b16 %v611, %v609
    %v810 = vpack.c.b16 %v614, %v612
    %v811 = vpack.c.b16 %v615, %v613
    %v812 = vpack.c.b16 %v618, %v616
    %v813 = vpack.c.b16 %v619, %v617
    %v814 = vpack.c.b16 %v622, %v620
    %v815 = vpack.c.b16 %v623, %v621
    %v816 = vpack.c.b16 %v626, %v624
    %v817 = vpack.c.b16 %v627, %v625
    %v818 = vpack.c.b16 %v630, %v628
    %v819 = vpack.c.b16 %v631, %v629
    %v820 = vpack.c.b16 %v634, %v632
    %v821 = vpack.c.b16 %v635, %v633
    %v822 = vpack.c.b16 %v638, %v636
    %v823 = vpack.c.b16 %v639, %v637
    %v824 = vpack.c.b16 %v642, %v640
    %v825 = vpack.c.b16 %v643, %v641
    %v826 = vpack.c.b16 %v646, %v644
    %v827 = vpack.c.b16 %v647, %v645
    %v828 = vpack.c.b16 %v650, %v648
    %v829 = vpack.c.b16 %v651, %v649
    %v830 = vpack.c.b16 %v654, %v652
    %v831 = vpack.c.b16 %v655, %v653
    %v832 = vpack.c.b16 %v658, %v656
    %v833 = vpack.c.b16 %v659, %v657
    %v834 = vpack.c.b16 %v662, %v660
    %v835 = vpack.c.b16 %v663, %v661
    %v836 = vpack.c.b16 %v666, %v664
    %v837 = vpack.c.b16 %v667, %v665
    %v838 = vpack.c.b16 %v670, %v668
    %v839 = vpack.c.b16 %v671, %v669
    %v840 = vpack.c.b16 %v674, %v672
    %v841 = vpack.c.b16 %v675, %v673
    %v842 = vpack.c.b16 %v678, %v676
    %v843 = vpack.c.b16 %v679, %v677
    %v844 = vpack.c.b16 %v682, %v680
    %v845 = vpack.c.b16 %v683, %v681
    %v846 = vpack.c.b16 %v686, %v684
    %v847 = vpack.c.b16 %v687, %v685
    %v848 = vpack.c.b16 %v690, %v688
    %v849 = vpack.c.b16 %v691, %v689
    %v850 = vpack.c.b16 %v694, %v692
    %v851 = vpack.c.b16 %v695, %v693
    %v852 = vpack.c.b16 %v698, %v696
    %v853 = vpack.c.b16 %v699, %v697
    %v854 = vpack.c.b16 %v702, %v700
    %v855 = vpack.c.b16 %v703, %v701
    %v856 = vpack.c.b16 %v706, %v704
    %v857 = vpack.c.b16 %v707, %v705
    %v858 = vpack.c.b16 %v710, %v708
    %v859 = vpack.c.b16 %v711, %v709
    %v860 = vpack.c.b16 %v714, %v712
    %v861 = vpack.c.b16 %v715, %v713
    %v862 = vpack.c.b16 %v718, %v716
    %v863 = vpack.c.b16 %v719, %v717
    %v864 = vpack.c.b16 %v722, %v720
    %v865 = vpack.c.b16 %v723, %v721
    %v866 = vpack.c.b16 %v726, %v724
    %v867 = vpack.c.b16 %v727, %v725
    %v868 = vpack.c.b16 %v730, %v728
    %v869 = vpack.c.b16 %v731, %v729
    %v870 = vpack.c.b16 %v734, %v732
    %v871 = vpack.c.b16 %v735, %v733
    %v872 = vpack.c.b16 %v738, %v736
    %v873 = vpack.c.b16 %v739, %v737
    %v874 = vpack.c.b16 %v742, %v740
    %v875 = vpack.c.b16 %v743, %v741
    %v876 = vpack.c.b16 %v746, %v744
    %v877 = vpack.c.b16 %v747, %v745
    %v878 = vpack.c.b16 %v750, %v748
    %v879 = vpack.c.b16 %v751, %v749
    %1008 = vmatprep.subr.bf16.mxu0 %v753
    %1009 = vmatpush1.bf16.msra.mxu0 %v752
    %1010 = vmatprep.subr.bf16.mxu0 %v755
    %1011 = vmatpush1.bf16.msra.mxu0 %v754
    %1012 = vmatprep.subr.bf16.mxu0 %v757
    %1013 = vmatpush1.bf16.msra.mxu0 %v756
    %1014 = vmatprep.subr.bf16.mxu0 %v759
    %1015 = vmatpush1.bf16.msra.mxu0 %v758
    %1016 = vmatprep.subr.bf16.mxu0 %v761
    %1017 = vmatpush1.bf16.msra.mxu0 %v760
    %1018 = vmatprep.subr.bf16.mxu0 %v763
    %1019 = vmatpush1.bf16.msra.mxu0 %v762
    %1020 = vmatprep.subr.bf16.mxu0 %v765
    %1021 = vmatpush1.bf16.msra.mxu0 %v764
    %1022 = vmatprep.subr.bf16.mxu0 %v767
    %1023 = vmatpush1.bf16.msra.mxu0 %v766
    %1024 = vmatprep.subr.bf16.mxu0 %v769
    %1025 = vmatpush1.bf16.msra.mxu0 %v768
    %1026 = vmatprep.subr.bf16.mxu0 %v771
    %1027 = vmatpush1.bf16.msra.mxu0 %v770
    %1028 = vmatprep.subr.bf16.mxu0 %v773
    %1029 = vmatpush1.bf16.msra.mxu0 %v772
    %1030 = vmatprep.subr.bf16.mxu0 %v775
    %1031 = vmatpush1.bf16.msra.mxu0 %v774
    %1032 = vmatprep.subr.bf16.mxu0 %v777
    %1033 = vmatpush1.bf16.msra.mxu0 %v776
    %1034 = vmatprep.subr.bf16.mxu0 %v779
    %1035 = vmatpush1.bf16.msra.mxu0 %v778
    %1036 = vmatprep.subr.bf16.mxu0 %v781
    %1037 = vmatpush1.bf16.msra.mxu0 %v780
    %1038 = vmatprep.subr.bf16.mxu0 %v783
    %1039 = vmatpush1.bf16.msra.mxu0 %v782
    %1040 = vmatprep.mubr.bf16.mxu0 %v348
    %1041 = vmatmul.mubr.bf16.gmra.mrb[0].mxu0 %v334
    %v1042 = vpop.f32.mrb[0].mxu0
    %v1043 = vadd.f32 0.0, %v1042
    %v1044 = vpop.f32.mrb[0].mxu0
    %v1045 = vadd.f32 0.0, %v1044
    %v1046 = vpop.f32.mrb[0].mxu0
    %v1047 = vpop.f32.mrb[0].mxu0
    %1048 = vdwg.mxu0
    %1049 = vmatprep.subr.bf16.mxu0 %v785
    %1050 = vmatpush1.bf16.msra.mxu0 %v784
    %1051 = vmatprep.subr.bf16.mxu0 %v787
    %1052 = vmatpush1.bf16.msra.mxu0 %v786
    %1053 = vmatprep.subr.bf16.mxu0 %v789
    %1054 = vmatpush1.bf16.msra.mxu0 %v788
    %1055 = vmatprep.subr.bf16.mxu0 %v791
    %1056 = vmatpush1.bf16.msra.mxu0 %v790
    %1057 = vmatprep.subr.bf16.mxu0 %v793
    %1058 = vmatpush1.bf16.msra.mxu0 %v792
    %1059 = vmatprep.subr.bf16.mxu0 %v795
    %1060 = vmatpush1.bf16.msra.mxu0 %v794
    %1061 = vmatprep.subr.bf16.mxu0 %v797
    %1062 = vmatpush1.bf16.msra.mxu0 %v796
    %1063 = vmatprep.subr.bf16.mxu0 %v799
    %1064 = vmatpush1.bf16.msra.mxu0 %v798
    %1065 = vmatprep.subr.bf16.mxu0 %v801
    %1066 = vmatpush1.bf16.msra.mxu0 %v800
    %1067 = vmatprep.subr.bf16.mxu0 %v803
    %1068 = vmatpush1.bf16.msra.mxu0 %v802
    %1069 = vmatprep.subr.bf16.mxu0 %v805
    %1070 = vmatpush1.bf16.msra.mxu0 %v804
    %1071 = vmatprep.subr.bf16.mxu0 %v807
    %1072 = vmatpush1.bf16.msra.mxu0 %v806
    %1073 = vmatprep.subr.bf16.mxu0 %v809
    %1074 = vmatpush1.bf16.msra.mxu0 %v808
    %1075 = vmatprep.subr.bf16.mxu0 %v811
    %1076 = vmatpush1.bf16.msra.mxu0 %v810
    %1077 = vmatprep.subr.bf16.mxu0 %v813
    %1078 = vmatpush1.bf16.msra.mxu0 %v812
    %1079 = vmatprep.subr.bf16.mxu0 %v815
    %1080 = vmatpush1.bf16.msra.mxu0 %v814
    %1081 = vmatprep.mubr.bf16.mxu0 %v358
    %1082 = vmatmul.mubr.bf16.gmra.mrb[0].mxu0 %v356
    %v1083 = vpop.f32.mrb[0].mxu0
    %v1084 = vadd.f32 %v1043, %v1083
    %v1085 = vpop.f32.mrb[0].mxu0
    %v1086 = vadd.f32 %v1045, %v1085
    %v1087 = vpop.f32.mrb[0].mxu0
    %v1088 = vpop.f32.mrb[0].mxu0
    %1089 = vdwg.mxu0
    %1090 = vmatprep.subr.bf16.mxu0 %v817
    %1091 = vmatpush1.bf16.msra.mxu0 %v816
    %1092 = vmatprep.subr.bf16.mxu0 %v819
    %1093 = vmatpush1.bf16.msra.mxu0 %v818
    %1094 = vmatprep.subr.bf16.mxu0 %v821
    %1095 = vmatpush1.bf16.msra.mxu0 %v820
    %1096 = vmatprep.subr.bf16.mxu0 %v823
    %1097 = vmatpush1.bf16.msra.mxu0 %v822
    %1098 = vmatprep.subr.bf16.mxu0 %v825
    %1099 = vmatpush1.bf16.msra.mxu0 %v824
    %1100 = vmatprep.subr.bf16.mxu0 %v827
    %1101 = vmatpush1.bf16.msra.mxu0 %v826
    %1102 = vmatprep.subr.bf16.mxu0 %v829
    %1103 = vmatpush1.bf16.msra.mxu0 %v828
    %1104 = vmatprep.subr.bf16.mxu0 %v831
    %1105 = vmatpush1.bf16.msra.mxu0 %v830
    %1106 = vmatprep.subr.bf16.mxu0 %v833
    %1107 = vmatpush1.bf16.msra.mxu0 %v832
    %1108 = vmatprep.subr.bf16.mxu0 %v835
    %1109 = vmatpush1.bf16.msra.mxu0 %v834
    %1110 = vmatprep.subr.bf16.mxu0 %v837
    %1111 = vmatpush1.bf16.msra.mxu0 %v836
    %1112 = vmatprep.subr.bf16.mxu0 %v839
    %1113 = vmatpush1.bf16.msra.mxu0 %v838
    %1114 = vmatprep.subr.bf16.mxu0 %v841
    %1115 = vmatpush1.bf16.msra.mxu0 %v840
    %1116 = vmatprep.subr.bf16.mxu0 %v843
    %1117 = vmatpush1.bf16.msra.mxu0 %v842
    %1118 = vmatprep.subr.bf16.mxu0 %v845
    %1119 = vmatpush1.bf16.msra.mxu0 %v844
    %1120 = vmatprep.subr.bf16.mxu0 %v847
    %1121 = vmatpush1.bf16.msra.mxu0 %v846
    %1122 = vmatprep.mubr.bf16.mxu0 %v355
    %1123 = vmatmul.mubr.bf16.gmra.mrb[0].mxu0 %v341
    %v1124 = vpop.f32.mrb[0].mxu0
    %v1125 = vadd.f32 %v1084, %v1124
    %v1126 = vpop.f32.mrb[0].mxu0
    %v1127 = vadd.f32 %v1086, %v1126
    %v1128 = vpop.f32.mrb[0].mxu0
    %v1129 = vpop.f32.mrb[0].mxu0
    %1130 = vdwg.mxu0
    %1131 = vmatprep.subr.bf16.mxu0 %v849
    %1132 = vmatpush1.bf16.msra.mxu0 %v848
    %1133 = vmatprep.subr.bf16.mxu0 %v851
    %1134 = vmatpush1.bf16.msra.mxu0 %v850
    %1135 = vmatprep.subr.bf16.mxu0 %v853
    %1136 = vmatpush1.bf16.msra.mxu0 %v852
    %1137 = vmatprep.subr.bf16.mxu0 %v855
    %1138 = vmatpush1.bf16.msra.mxu0 %v854
    %1139 = vmatprep.subr.bf16.mxu0 %v857
    %1140 = vmatpush1.bf16.msra.mxu0 %v856
    %1141 = vmatprep.subr.bf16.mxu0 %v859
    %1142 = vmatpush1.bf16.msra.mxu0 %v858
    %1143 = vmatprep.subr.bf16.mxu0 %v861
    %1144 = vmatpush1.bf16.msra.mxu0 %v860
    %1145 = vmatprep.subr.bf16.mxu0 %v863
    %1146 = vmatpush1.bf16.msra.mxu0 %v862
    %1147 = vmatprep.subr.bf16.mxu0 %v865
    %1148 = vmatpush1.bf16.msra.mxu0 %v864
    %1149 = vmatprep.subr.bf16.mxu0 %v867
    %1150 = vmatpush1.bf16.msra.mxu0 %v866
    %1151 = vmatprep.subr.bf16.mxu0 %v869
    %1152 = vmatpush1.bf16.msra.mxu0 %v868
    %1153 = vmatprep.subr.bf16.mxu0 %v871
    %1154 = vmatpush1.bf16.msra.mxu0 %v870
    %1155 = vmatprep.subr.bf16.mxu0 %v873
    %1156 = vmatpush1.bf16.msra.mxu0 %v872
    %1157 = vmatprep.subr.bf16.mxu0 %v875
    %1158 = vmatpush1.bf16.msra.mxu0 %v874
    %1159 = vmatprep.subr.bf16.mxu0 %v877
    %1160 = vmatpush1.bf16.msra.mxu0 %v876
    %1161 = vmatprep.subr.bf16.mxu0 %v879
    %1162 = vmatpush1.bf16.msra.mxu0 %v878
    %1163 = vmatprep.mubr.bf16.mxu0 %v359
    %1164 = vmatmul.mubr.bf16.gmra.mrb[0].mxu0 %v357
    %v1165 = vpop.f32.mrb[0].mxu0
    %v1166 = vadd.f32 %v1125, %v1165
    %v1167 = vpop.f32.mrb[0].mxu0
    %v1168 = vadd.f32 %v1127, %v1167
    %v1169 = vpop.f32.mrb[0].mxu0
    %v1170 = vpop.f32.mrb[0].mxu0
    %1171 = vdwg.mxu0
    %v1300 = vunpack.c.l.b16 %v53
    %v1301 = vunpack.c.h.b16 %v53
    %v1302 = vunpack.c.l.b16 %v54
    %v1303 = vunpack.c.h.b16 %v54
    %v1304 = vunpack.c.l.b16 %v55
    %v1305 = vunpack.c.h.b16 %v55
    %v1306 = vunpack.c.l.b16 %v56
    %v1307 = vunpack.c.h.b16 %v56
    %v1308 = vunpack.c.l.b16 %v57
    %v1309 = vunpack.c.h.b16 %v57
    %v1310 = vunpack.c.l.b16 %v58
    %v1311 = vunpack.c.h.b16 %v58
    %v1312 = vunpack.c.l.b16 %v59
    %v1313 = vunpack.c.h.b16 %v59
    %v1314 = vunpack.c.l.b16 %v60
    %v1315 = vunpack.c.h.b16 %v60
    %v1316 = vunpack.c.l.b16 %v61
    %v1317 = vunpack.c.h.b16 %v61
    %v1318 = vunpack.c.l.b16 %v62
    %v1319 = vunpack.c.h.b16 %v62
    %v1320 = vunpack.c.l.b16 %v63
    %v1321 = vunpack.c.h.b16 %v63
    %v1322 = vunpack.c.l.b16 %v64
    %v1323 = vunpack.c.h.b16 %v64
    %v1324 = vunpack.c.l.b16 %v65
    %v1325 = vunpack.c.h.b16 %v65
    %v1326 = vunpack.c.l.b16 %v66
    %v1327 = vunpack.c.h.b16 %v66
    %v1328 = vunpack.c.l.b16 %v67
    %v1329 = vunpack.c.h.b16 %v67
    %v1330 = vunpack.c.l.b16 %v68
    %v1331 = vunpack.c.h.b16 %v68
    %v1332 = vunpack.c.l.b16 %v69
    %v1333 = vunpack.c.h.b16 %v69
    %v1334 = vunpack.c.l.b16 %v70
    %v1335 = vunpack.c.h.b16 %v70
    %v1336 = vunpack.c.l.b16 %v71
    %v1337 = vunpack.c.h.b16 %v71
    %v1338 = vunpack.c.l.b16 %v72
    %v1339 = vunpack.c.h.b16 %v72
    %v1340 = vunpack.c.l.b16 %v73
    %v1341 = vunpack.c.h.b16 %v73
    %v1342 = vunpack.c.l.b16 %v74
    %v1343 = vunpack.c.h.b16 %v74
    %v1344 = vunpack.c.l.b16 %v75
    %v1345 = vunpack.c.h.b16 %v75
    %v1346 = vunpack.c.l.b16 %v76
    %v1347 = vunpack.c.h.b16 %v76
    %v1348 = vunpack.c.l.b16 %v77
    %v1349 = vunpack.c.h.b16 %v77
    %v1350 = vunpack.c.l.b16 %v78
    %v1351 = vunpack.c.h.b16 %v78
    %v1352 = vunpack.c.l.b16 %v79
    %v1353 = vunpack.c.h.b16 %v79
    %v1354 = vunpack.c.l.b16 %v80
    %v1355 = vunpack.c.h.b16 %v80
    %v1356 = vunpack.c.l.b16 %v81
    %v1357 = vunpack.c.h.b16 %v81
    %v1358 = vunpack.c.l.b16 %v82
    %v1359 = vunpack.c.h.b16 %v82
    %v1360 = vunpack.c.l.b16 %v83
    %v1361 = vunpack.c.h.b16 %v83
    %v1362 = vunpack.c.l.b16 %v84
    %v1363 = vunpack.c.h.b16 %v84
    %v1364 = vunpack.c.l.b16 %v85
    %v1365 = vunpack.c.h.b16 %v85
    %v1366 = vunpack.c.l.b16 %v86
    %v1367 = vunpack.c.h.b16 %v86
    %v1368 = vunpack.c.l.b16 %v87
    %v1369 = vunpack.c.h.b16 %v87
    %v1370 = vunpack.c.l.b16 %v88
    %v1371 = vunpack.c.h.b16 %v88
    %v1372 = vunpack.c.l.b16 %v89
    %v1373 = vunpack.c.h.b16 %v89
    %v1374 = vunpack.c.l.b16 %v90
    %v1375 = vunpack.c.h.b16 %v90
    %v1376 = vunpack.c.l.b16 %v91
    %v1377 = vunpack.c.h.b16 %v91
    %v1378 = vunpack.c.l.b16 %v92
    %v1379 = vunpack.c.h.b16 %v92
    %v1380 = vunpack.c.l.b16 %v93
    %v1381 = vunpack.c.h.b16 %v93
    %v1382 = vunpack.c.l.b16 %v94
    %v1383 = vunpack.c.h.b16 %v94
    %v1384 = vunpack.c.l.b16 %v95
    %v1385 = vunpack.c.h.b16 %v95
    %v1386 = vunpack.c.l.b16 %v96
    %v1387 = vunpack.c.h.b16 %v96
    %v1388 = vunpack.c.l.b16 %v97
    %v1389 = vunpack.c.h.b16 %v97
    %v1390 = vunpack.c.l.b16 %v98
    %v1391 = vunpack.c.h.b16 %v98
    %v1392 = vunpack.c.l.b16 %v99
    %v1393 = vunpack.c.h.b16 %v99
    %v1394 = vunpack.c.l.b16 %v100
    %v1395 = vunpack.c.h.b16 %v100
    %v1396 = vunpack.c.l.b16 %v101
    %v1397 = vunpack.c.h.b16 %v101
    %v1398 = vunpack.c.l.b16 %v102
    %v1399 = vunpack.c.h.b16 %v102
    %v1400 = vunpack.c.l.b16 %v103
    %v1401 = vunpack.c.h.b16 %v103
    %v1402 = vunpack.c.l.b16 %v104
    %v1403 = vunpack.c.h.b16 %v104
    %v1404 = vunpack.c.l.b16 %v105
    %v1405 = vunpack.c.h.b16 %v105
    %v1406 = vunpack.c.l.b16 %v106
    %v1407 = vunpack.c.h.b16 %v106
    %v1408 = vunpack.c.l.b16 %v107
    %v1409 = vunpack.c.h.b16 %v107
    %v1410 = vunpack.c.l.b16 %v108
    %v1411 = vunpack.c.h.b16 %v108
    %v1412 = vunpack.c.l.b16 %v109
    %v1413 = vunpack.c.h.b16 %v109
    %v1414 = vunpack.c.l.b16 %v110
    %v1415 = vunpack.c.h.b16 %v110
    %v1416 = vunpack.c.l.b16 %v111
    %v1417 = vunpack.c.h.b16 %v111
    %v1418 = vunpack.c.l.b16 %v112
    %v1419 = vunpack.c.h.b16 %v112
    %v1420 = vunpack.c.l.b16 %v113
    %v1421 = vunpack.c.h.b16 %v113
    %v1422 = vunpack.c.l.b16 %v114
    %v1423 = vunpack.c.h.b16 %v114
    %v1424 = vunpack.c.l.b16 %v115
    %v1425 = vunpack.c.h.b16 %v115
    %v1426 = vunpack.c.l.b16 %v116
    %v1427 = vunpack.c.h.b16 %v116
    %v1428 = vunpack.c.l.b16 %v117
    %v1429 = vunpack.c.h.b16 %v117
    %v1430 = vunpack.c.l.b16 %v118
    %v1431 = vunpack.c.h.b16 %v118
    %v1432 = vunpack.c.l.b16 %v119
    %v1433 = vunpack.c.h.b16 %v119
    %v1434 = vunpack.c.l.b16 %v120
    %v1435 = vunpack.c.h.b16 %v120
    %v1436 = vunpack.c.l.b16 %v121
    %v1437 = vunpack.c.h.b16 %v121
    %v1438 = vunpack.c.l.b16 %v122
    %v1439 = vunpack.c.h.b16 %v122
    %v1440 = vunpack.c.l.b16 %v123
    %v1441 = vunpack.c.h.b16 %v123
    %v1442 = vunpack.c.l.b16 %v124
    %v1443 = vunpack.c.h.b16 %v124
    %v1444 = vunpack.c.l.b16 %v125
    %v1445 = vunpack.c.h.b16 %v125
    %v1446 = vunpack.c.l.b16 %v126
    %v1447 = vunpack.c.h.b16 %v126
    %v1448 = vunpack.c.l.b16 %v127
    %v1449 = vunpack.c.h.b16 %v127
    %v1450 = vunpack.c.l.b16 %v128
    %v1451 = vunpack.c.h.b16 %v128
    %v1452 = vunpack.c.l.b16 %v129
    %v1453 = vunpack.c.h.b16 %v129
    %v1454 = vunpack.c.l.b16 %v130
    %v1455 = vunpack.c.h.b16 %v130
    %v1456 = vunpack.c.l.b16 %v131
    %v1457 = vunpack.c.h.b16 %v131
    %v1458 = vunpack.c.l.b16 %v132
    %v1459 = vunpack.c.h.b16 %v132
    %v1460 = vunpack.c.l.b16 %v133
    %v1461 = vunpack.c.h.b16 %v133
    %v1462 = vunpack.c.l.b16 %v134
    %v1463 = vunpack.c.h.b16 %v134
    %v1464 = vunpack.c.l.b16 %v135
    %v1465 = vunpack.c.h.b16 %v135
    %v1466 = vunpack.c.l.b16 %v136
    %v1467 = vunpack.c.h.b16 %v136
    %v1468 = vunpack.c.l.b16 %v137
    %v1469 = vunpack.c.h.b16 %v137
    %v1470 = vunpack.c.l.b16 %v138
    %v1471 = vunpack.c.h.b16 %v138
    %v1472 = vunpack.c.l.b16 %v139
    %v1473 = vunpack.c.h.b16 %v139
    %v1474 = vunpack.c.l.b16 %v140
    %v1475 = vunpack.c.h.b16 %v140
    %v1476 = vunpack.c.l.b16 %v141
    %v1477 = vunpack.c.h.b16 %v141
    %v1478 = vunpack.c.l.b16 %v142
    %v1479 = vunpack.c.h.b16 %v142
    %v1480 = vunpack.c.l.b16 %v143
    %v1481 = vunpack.c.h.b16 %v143
    %v1482 = vunpack.c.l.b16 %v144
    %v1483 = vunpack.c.h.b16 %v144
    %v1484 = vunpack.c.l.b16 %v145
    %v1485 = vunpack.c.h.b16 %v145
    %v1486 = vunpack.c.l.b16 %v146
    %v1487 = vunpack.c.h.b16 %v146
    %v1488 = vunpack.c.l.b16 %v147
    %v1489 = vunpack.c.h.b16 %v147
    %v1490 = vunpack.c.l.b16 %v148
    %v1491 = vunpack.c.h.b16 %v148
    %v1492 = vunpack.c.l.b16 %v149
    %v1493 = vunpack.c.h.b16 %v149
    %v1494 = vunpack.c.l.b16 %v150
    %v1495 = vunpack.c.h.b16 %v150
    %v1496 = vunpack.c.l.b16 %v151
    %v1497 = vunpack.c.h.b16 %v151
    %v1498 = vunpack.c.l.b16 %v152
    %v1499 = vunpack.c.h.b16 %v152
    %v1500 = vunpack.c.l.b16 %v153
    %v1501 = vunpack.c.h.b16 %v153
    %v1502 = vunpack.c.l.b16 %v154
    %v1503 = vunpack.c.h.b16 %v154
    %v1504 = vunpack.c.l.b16 %v155
    %v1505 = vunpack.c.h.b16 %v155
    %v1506 = vunpack.c.l.b16 %v156
    %v1507 = vunpack.c.h.b16 %v156
    %v1508 = vunpack.c.l.b16 %v157
    %v1509 = vunpack.c.h.b16 %v157
    %v1510 = vunpack.c.l.b16 %v158
    %v1511 = vunpack.c.h.b16 %v158
    %v1512 = vunpack.c.l.b16 %v159
    %v1513 = vunpack.c.h.b16 %v159
    %v1514 = vunpack.c.l.b16 %v160
    %v1515 = vunpack.c.h.b16 %v160
    %v1516 = vunpack.c.l.b16 %v161
    %v1517 = vunpack.c.h.b16 %v161
    %v1518 = vunpack.c.l.b16 %v162
    %v1519 = vunpack.c.h.b16 %v162
    %v1520 = vunpack.c.l.b16 %v163
    %v1521 = vunpack.c.h.b16 %v163
    %v1522 = vunpack.c.l.b16 %v164
    %v1523 = vunpack.c.h.b16 %v164
    %v1524 = vunpack.c.l.b16 %v165
    %v1525 = vunpack.c.h.b16 %v165
    %v1526 = vunpack.c.l.b16 %v166
    %v1527 = vunpack.c.h.b16 %v166
    %v1528 = vunpack.c.l.b16 %v167
    %v1529 = vunpack.c.h.b16 %v167
    %v1530 = vunpack.c.l.b16 %v168
    %v1531 = vunpack.c.h.b16 %v168
    %v1532 = vunpack.c.l.b16 %v169
    %v1533 = vunpack.c.h.b16 %v169
    %v1534 = vunpack.c.l.b16 %v170
    %v1535 = vunpack.c.h.b16 %v170
    %v1536 = vunpack.c.l.b16 %v171
    %v1537 = vunpack.c.h.b16 %v171
    %v1538 = vunpack.c.l.b16 %v172
    %v1539 = vunpack.c.h.b16 %v172
    %v1540 = vunpack.c.l.b16 %v173
    %v1541 = vunpack.c.h.b16 %v173
    %v1542 = vunpack.c.l.b16 %v174
    %v1543 = vunpack.c.h.b16 %v174
    %v1544 = vunpack.c.l.b16 %v175
    %v1545 = vunpack.c.h.b16 %v175
    %v1546 = vunpack.c.l.b16 %v176
    %v1547 = vunpack.c.h.b16 %v176
    %v1548 = vunpack.c.l.b16 %v177
    %v1549 = vunpack.c.h.b16 %v177
    %v1550 = vunpack.c.l.b16 %v178
    %v1551 = vunpack.c.h.b16 %v178
    %v1552 = vunpack.c.l.b16 %v179
    %v1553 = vunpack.c.h.b16 %v179
    %v1554 = vunpack.c.l.b16 %v180
    %v1555 = vunpack.c.h.b16 %v180
    %v1556 = vpack.c.b16 %v1302, %v1300
    %v1557 = vpack.c.b16 %v1303, %v1301
    %v1558 = vpack.c.b16 %v1306, %v1304
    %v1559 = vpack.c.b16 %v1307, %v1305
    %v1560 = vpack.c.b16 %v1310, %v1308
    %v1561 = vpack.c.b16 %v1311, %v1309
    %v1562 = vpack.c.b16 %v1314, %v1312
    %v1563 = vpack.c.b16 %v1315, %v1313
    %v1564 = vpack.c.b16 %v1318, %v1316
    %v1565 = vpack.c.b16 %v1319, %v1317
    %v1566 = vpack.c.b16 %v1322, %v1320
    %v1567 = vpack.c.b16 %v1323, %v1321
    %v1568 = vpack.c.b16 %v1326, %v1324
    %v1569 = vpack.c.b16 %v1327, %v1325
    %v1570 = vpack.c.b16 %v1330, %v1328
    %v1571 = vpack.c.b16 %v1331, %v1329
    %v1572 = vpack.c.b16 %v1334, %v1332
    %v1573 = vpack.c.b16 %v1335, %v1333
    %v1574 = vpack.c.b16 %v1338, %v1336
    %v1575 = vpack.c.b16 %v1339, %v1337
    %v1576 = vpack.c.b16 %v1342, %v1340
    %v1577 = vpack.c.b16 %v1343, %v1341
    %v1578 = vpack.c.b16 %v1346, %v1344
    %v1579 = vpack.c.b16 %v1347, %v1345
    %v1580 = vpack.c.b16 %v1350, %v1348
    %v1581 = vpack.c.b16 %v1351, %v1349
    %v1582 = vpack.c.b16 %v1354, %v1352
    %v1583 = vpack.c.b16 %v1355, %v1353
    %v1584 = vpack.c.b16 %v1358, %v1356
    %v1585 = vpack.c.b16 %v1359, %v1357
    %v1586 = vpack.c.b16 %v1362, %v1360
    %v1587 = vpack.c.b16 %v1363, %v1361
    %v1588 = vpack.c.b16 %v1366, %v1364
    %v1589 = vpack.c.b16 %v1367, %v1365
    %v1590 = vpack.c.b16 %v1370, %v1368
    %v1591 = vpack.c.b16 %v1371, %v1369
    %v1592 = vpack.c.b16 %v1374, %v1372
    %v1593 = vpack.c.b16 %v1375, %v1373
    %v1594 = vpack.c.b16 %v1378, %v1376
    %v1595 = vpack.c.b16 %v1379, %v1377
    %v1596 = vpack.c.b16 %v1382, %v1380
    %v1597 = vpack.c.b16 %v1383, %v1381
    %v1598 = vpack.c.b16 %v1386, %v1384
    %v1599 = vpack.c.b16 %v1387, %v1385
    %v1600 = vpack.c.b16 %v1390, %v1388
    %v1601 = vpack.c.b16 %v1391, %v1389
    %v1602 = vpack.c.b16 %v1394, %v1392
    %v1603 = vpack.c.b16 %v1395, %v1393
    %v1604 = vpack.c.b16 %v1398, %v1396
    %v1605 = vpack.c.b16 %v1399, %v1397
    %v1606 = vpack.c.b16 %v1402, %v1400
    %v1607 = vpack.c.b16 %v1403, %v1401
    %v1608 = vpack.c.b16 %v1406, %v1404
    %v1609 = vpack.c.b16 %v1407, %v1405
    %v1610 = vpack.c.b16 %v1410, %v1408
    %v1611 = vpack.c.b16 %v1411, %v1409
    %v1612 = vpack.c.b16 %v1414, %v1412
    %v1613 = vpack.c.b16 %v1415, %v1413
    %v1614 = vpack.c.b16 %v1418, %v1416
    %v1615 = vpack.c.b16 %v1419, %v1417
    %v1616 = vpack.c.b16 %v1422, %v1420
    %v1617 = vpack.c.b16 %v1423, %v1421
    %v1618 = vpack.c.b16 %v1426, %v1424
    %v1619 = vpack.c.b16 %v1427, %v1425
    %v1620 = vpack.c.b16 %v1430, %v1428
    %v1621 = vpack.c.b16 %v1431, %v1429
    %v1622 = vpack.c.b16 %v1434, %v1432
    %v1623 = vpack.c.b16 %v1435, %v1433
    %v1624 = vpack.c.b16 %v1438, %v1436
    %v1625 = vpack.c.b16 %v1439, %v1437
    %v1626 = vpack.c.b16 %v1442, %v1440
    %v1627 = vpack.c.b16 %v1443, %v1441
    %v1628 = vpack.c.b16 %v1446, %v1444
    %v1629 = vpack.c.b16 %v1447, %v1445
    %v1630 = vpack.c.b16 %v1450, %v1448
    %v1631 = vpack.c.b16 %v1451, %v1449
    %v1632 = vpack.c.b16 %v1454, %v1452
    %v1633 = vpack.c.b16 %v1455, %v1453
    %v1634 = vpack.c.b16 %v1458, %v1456
    %v1635 = vpack.c.b16 %v1459, %v1457
    %v1636 = vpack.c.b16 %v1462, %v1460
    %v1637 = vpack.c.b16 %v1463, %v1461
    %v1638 = vpack.c.b16 %v1466, %v1464
    %v1639 = vpack.c.b16 %v1467, %v1465
    %v1640 = vpack.c.b16 %v1470, %v1468
    %v1641 = vpack.c.b16 %v1471, %v1469
    %v1642 = vpack.c.b16 %v1474, %v1472
    %v1643 = vpack.c.b16 %v1475, %v1473
    %v1644 = vpack.c.b16 %v1478, %v1476
    %v1645 = vpack.c.b16 %v1479, %v1477
    %v1646 = vpack.c.b16 %v1482, %v1480
    %v1647 = vpack.c.b16 %v1483, %v1481
    %v1648 = vpack.c.b16 %v1486, %v1484
    %v1649 = vpack.c.b16 %v1487, %v1485
    %v1650 = vpack.c.b16 %v1490, %v1488
    %v1651 = vpack.c.b16 %v1491, %v1489
    %v1652 = vpack.c.b16 %v1494, %v1492
    %v1653 = vpack.c.b16 %v1495, %v1493
    %v1654 = vpack.c.b16 %v1498, %v1496
    %v1655 = vpack.c.b16 %v1499, %v1497
    %v1656 = vpack.c.b16 %v1502, %v1500
    %v1657 = vpack.c.b16 %v1503, %v1501
    %v1658 = vpack.c.b16 %v1506, %v1504
    %v1659 = vpack.c.b16 %v1507, %v1505
    %v1660 = vpack.c.b16 %v1510, %v1508
    %v1661 = vpack.c.b16 %v1511, %v1509
    %v1662 = vpack.c.b16 %v1514, %v1512
    %v1663 = vpack.c.b16 %v1515, %v1513
    %v1664 = vpack.c.b16 %v1518, %v1516
    %v1665 = vpack.c.b16 %v1519, %v1517
    %v1666 = vpack.c.b16 %v1522, %v1520
    %v1667 = vpack.c.b16 %v1523, %v1521
    %v1668 = vpack.c.b16 %v1526, %v1524
    %v1669 = vpack.c.b16 %v1527, %v1525
    %v1670 = vpack.c.b16 %v1530, %v1528
    %v1671 = vpack.c.b16 %v1531, %v1529
    %v1672 = vpack.c.b16 %v1534, %v1532
    %v1673 = vpack.c.b16 %v1535, %v1533
    %v1674 = vpack.c.b16 %v1538, %v1536
    %v1675 = vpack.c.b16 %v1539, %v1537
    %v1676 = vpack.c.b16 %v1542, %v1540
    %v1677 = vpack.c.b16 %v1543, %v1541
    %v1678 = vpack.c.b16 %v1546, %v1544
    %v1679 = vpack.c.b16 %v1547, %v1545
    %v1680 = vpack.c.b16 %v1550, %v1548
    %v1681 = vpack.c.b16 %v1551, %v1549
    %v1682 = vpack.c.b16 %v1554, %v1552
    %v1683 = vpack.c.b16 %v1555, %v1553
    %1812 = vmatprep.subr.bf16.mxu0 %v1557
    %1813 = vmatpush1.bf16.msra.mxu0 %v1556
    %1814 = vmatprep.subr.bf16.mxu0 %v1559
    %1815 = vmatpush1.bf16.msra.mxu0 %v1558
    %1816 = vmatprep.subr.bf16.mxu0 %v1561
    %1817 = vmatpush1.bf16.msra.mxu0 %v1560
    %1818 = vmatprep.subr.bf16.mxu0 %v1563
    %1819 = vmatpush1.bf16.msra.mxu0 %v1562
    %1820 = vmatprep.subr.bf16.mxu0 %v1565
    %1821 = vmatpush1.bf16.msra.mxu0 %v1564
    %1822 = vmatprep.subr.bf16.mxu0 %v1567
    %1823 = vmatpush1.bf16.msra.mxu0 %v1566
    %1824 = vmatprep.subr.bf16.mxu0 %v1569
    %1825 = vmatpush1.bf16.msra.mxu0 %v1568
    %1826 = vmatprep.subr.bf16.mxu0 %v1571
    %1827 = vmatpush1.bf16.msra.mxu0 %v1570
    %1828 = vmatprep.subr.bf16.mxu0 %v1573
    %1829 = vmatpush1.bf16.msra.mxu0 %v1572
    %1830 = vmatprep.subr.bf16.mxu0 %v1575
    %1831 = vmatpush1.bf16.msra.mxu0 %v1574
    %1832 = vmatprep.subr.bf16.mxu0 %v1577
    %1833 = vmatpush1.bf16.msra.mxu0 %v1576
    %1834 = vmatprep.subr.bf16.mxu0 %v1579
    %1835 = vmatpush1.bf16.msra.mxu0 %v1578
    %1836 = vmatprep.subr.bf16.mxu0 %v1581
    %1837 = vmatpush1.bf16.msra.mxu0 %v1580
    %1838 = vmatprep.subr.bf16.mxu0 %v1583
    %1839 = vmatpush1.bf16.msra.mxu0 %v1582
    %1840 = vmatprep.subr.bf16.mxu0 %v1585
    %1841 = vmatpush1.bf16.msra.mxu0 %v1584
    %1842 = vmatprep.subr.bf16.mxu0 %v1587
    %1843 = vmatpush1.bf16.msra.mxu0 %v1586
    %1844 = vmatprep.mubr.bf16.mxu0 %v348
    %1845 = vmatmul.mubr.bf16.gmra.mrb[0].mxu0 %v334
    %v1846 = vpop.f32.mrb[0].mxu0
    %v1847 = vadd.f32 %v1166, %v1846
    %v1848 = vpop.f32.mrb[0].mxu0
    %v1849 = vadd.f32 %v1168, %v1848
    %v1850 = vpop.f32.mrb[0].mxu0
    %v1851 = vpop.f32.mrb[0].mxu0
    %1852 = vdwg.mxu0
    %1853 = vmatprep.subr.bf16.mxu0 %v1589
    %1854 = vmatpush1.bf16.msra.mxu0 %v1588
    %1855 = vmatprep.subr.bf16.mxu0 %v1591
    %1856 = vmatpush1.bf16.msra.mxu0 %v1590
    %1857 = vmatprep.subr.bf16.mxu0 %v1593
    %1858 = vmatpush1.bf16.msra.mxu0 %v1592
    %1859 = vmatprep.subr.bf16.mxu0 %v1595
    %1860 = vmatpush1.bf16.msra.mxu0 %v1594
    %1861 = vmatprep.subr.bf16.mxu0 %v1597
    %1862 = vmatpush1.bf16.msra.mxu0 %v1596
    %1863 = vmatprep.subr.bf16.mxu0 %v1599
    %1864 = vmatpush1.bf16.msra.mxu0 %v1598
    %1865 = vmatprep.subr.bf16.mxu0 %v1601
    %1866 = vmatpush1.bf16.msra.mxu0 %v1600
    %1867 = vmatprep.subr.bf16.mxu0 %v1603
    %1868 = vmatpush1.bf16.msra.mxu0 %v1602
    %1869 = vmatprep.subr.bf16.mxu0 %v1605
    %1870 = vmatpush1.bf16.msra.mxu0 %v1604
    %1871 = vmatprep.subr.bf16.mxu0 %v1607
    %1872 = vmatpush1.bf16.msra.mxu0 %v1606
    %1873 = vmatprep.subr.bf16.mxu0 %v1609
    %1874 = vmatpush1.bf16.msra.mxu0 %v1608
    %1875 = vmatprep.subr.bf16.mxu0 %v1611
    %1876 = vmatpush1.bf16.msra.mxu0 %v1610
    %1877 = vmatprep.subr.bf16.mxu0 %v1613
    %1878 = vmatpush1.bf16.msra.mxu0 %v1612
    %1879 = vmatprep.subr.bf16.mxu0 %v1615
    %1880 = vmatpush1.bf16.msra.mxu0 %v1614
    %1881 = vmatprep.subr.bf16.mxu0 %v1617
    %1882 = vmatpush1.bf16.msra.mxu0 %v1616
    %1883 = vmatprep.subr.bf16.mxu0 %v1619
    %1884 = vmatpush1.bf16.msra.mxu0 %v1618
    %1885 = vmatprep.mubr.bf16.mxu0 %v358
    %1886 = vmatmul.mubr.bf16.gmra.mrb[0].mxu0 %v356
    %v1887 = vpop.f32.mrb[0].mxu0
    %v1888 = vadd.f32 %v1847, %v1887
    %v1889 = vpop.f32.mrb[0].mxu0
    %v1890 = vadd.f32 %v1849, %v1889
    %v1891 = vpop.f32.mrb[0].mxu0
    %v1892 = vpop.f32.mrb[0].mxu0
    %1893 = vdwg.mxu0
    %1894 = vmatprep.subr.bf16.mxu0 %v1621
    %1895 = vmatpush1.bf16.msra.mxu0 %v1620
    %1896 = vmatprep.subr.bf16.mxu0 %v1623
    %1897 = vmatpush1.bf16.msra.mxu0 %v1622
    %1898 = vmatprep.subr.bf16.mxu0 %v1625
    %1899 = vmatpush1.bf16.msra.mxu0 %v1624
    %1900 = vmatprep.subr.bf16.mxu0 %v1627
    %1901 = vmatpush1.bf16.msra.mxu0 %v1626
    %1902 = vmatprep.subr.bf16.mxu0 %v1629
    %1903 = vmatpush1.bf16.msra.mxu0 %v1628
    %1904 = vmatprep.subr.bf16.mxu0 %v1631
    %1905 = vmatpush1.bf16.msra.mxu0 %v1630
    %1906 = vmatprep.subr.bf16.mxu0 %v1633
    %1907 = vmatpush1.bf16.msra.mxu0 %v1632
    %1908 = vmatprep.subr.bf16.mxu0 %v1635
    %1909 = vmatpush1.bf16.msra.mxu0 %v1634
    %1910 = vmatprep.subr.bf16.mxu0 %v1637
    %1911 = vmatpush1.bf16.msra.mxu0 %v1636
    %1912 = vmatprep.subr.bf16.mxu0 %v1639
    %1913 = vmatpush1.bf16.msra.mxu0 %v1638
    %1914 = vmatprep.subr.bf16.mxu0 %v1641
    %1915 = vmatpush1.bf16.msra.mxu0 %v1640
    %1916 = vmatprep.subr.bf16.mxu0 %v1643
    %1917 = vmatpush1.bf16.msra.mxu0 %v1642
    %1918 = vmatprep.subr.bf16.mxu0 %v1645
    %1919 = vmatpush1.bf16.msra.mxu0 %v1644
    %1920 = vmatprep.subr.bf16.mxu0 %v1647
    %1921 = vmatpush1.bf16.msra.mxu0 %v1646
    %1922 = vmatprep.subr.bf16.mxu0 %v1649
    %1923 = vmatpush1.bf16.msra.mxu0 %v1648
    %1924 = vmatprep.subr.bf16.mxu0 %v1651
    %1925 = vmatpush1.bf16.msra.mxu0 %v1650
    %1926 = vmatprep.mubr.bf16.mxu0 %v355
    %1927 = vmatmul.mubr.bf16.gmra.mrb[0].mxu0 %v341
    %v1928 = vpop.f32.mrb[0].mxu0
    %v1929 = vadd.f32 %v1888, %v1928
    %v1930 = vpop.f32.mrb[0].mxu0
    %v1931 = vadd.f32 %v1890, %v1930
    %v1932 = vpop.f32.mrb[0].mxu0
    %v1933 = vpop.f32.mrb[0].mxu0
    %1934 = vdwg.mxu0
    %1935 = vmatprep.subr.bf16.mxu0 %v1653
    %1936 = vmatpush1.bf16.msra.mxu0 %v1652
    %1937 = vmatprep.subr.bf16.mxu0 %v1655
    %1938 = vmatpush1.bf16.msra.mxu0 %v1654
    %1939 = vmatprep.subr.bf16.mxu0 %v1657
    %1940 = vmatpush1.bf16.msra.mxu0 %v1656
    %1941 = vmatprep.subr.bf16.mxu0 %v1659
    %1942 = vmatpush1.bf16.msra.mxu0 %v1658
    %1943 = vmatprep.subr.bf16.mxu0 %v1661
    %1944 = vmatpush1.bf16.msra.mxu0 %v1660
    %1945 = vmatprep.subr.bf16.mxu0 %v1663
    %1946 = vmatpush1.bf16.msra.mxu0 %v1662
    %1947 = vmatprep.subr.bf16.mxu0 %v1665
    %1948 = vmatpush1.bf16.msra.mxu0 %v1664
    %1949 = vmatprep.subr.bf16.mxu0 %v1667
    %1950 = vmatpush1.bf16.msra.mxu0 %v1666
    %1951 = vmatprep.subr.bf16.mxu0 %v1669
    %1952 = vmatpush1.bf16.msra.mxu0 %v1668
    %1953 = vmatprep.subr.bf16.mxu0 %v1671
    %1954 = vmatpush1.bf16.msra.mxu0 %v1670
    %1955 = vmatprep.subr.bf16.mxu0 %v1673
    %1956 = vmatpush1.bf16.msra.mxu0 %v1672
    %1957 = vmatprep.subr.bf16.mxu0 %v1675
    %1958 = vmatpush1.bf16.msra.mxu0 %v1674
    %1959 = vmatprep.subr.bf16.mxu0 %v1677
    %1960 = vmatpush1.bf16.msra.mxu0 %v1676
    %1961 = vmatprep.subr.bf16.mxu0 %v1679
    %1962 = vmatpush1.bf16.msra.mxu0 %v1678
    %1963 = vmatprep.subr.bf16.mxu0 %v1681
    %1964 = vmatpush1.bf16.msra.mxu0 %v1680
    %1965 = vmatprep.subr.bf16.mxu0 %v1683
    %1966 = vmatpush1.bf16.msra.mxu0 %v1682
    %1967 = vmatprep.mubr.bf16.mxu0 %v359
    %1968 = vmatmul.mubr.bf16.gmra.mrb[0].mxu0 %v357
    %v1969 = vpop.f32.mrb[0].mxu0
    %v1970 = vadd.f32 %v1929, %v1969
    %v1971 = vpop.f32.mrb[0].mxu0
    %v1972 = vadd.f32 %v1931, %v1971
    %v1973 = vpop.f32.mrb[0].mxu0
    %v1974 = vpop.f32.mrb[0].mxu0
    %1975 = vdwg.mxu0
    %s1976 = scalar_lea.vmem [#allocation5], 2048
    %v1977 = vld [vmem:[%s1976] sm:$0xff]
    %v1978 = vld [vmem:[%s1976 + $0x8] sm:$0xff]
    %v1979 = vld [vmem:[%s1976 + $0x10] sm:$0xff]
    %v1980 = vld [vmem:[%s1976 + $0x18] sm:$0xff]
    %v1981 = vld [vmem:[%s1976 + $0x20] sm:$0xff]
    %v1982 = vld [vmem:[%s1976 + $0x28] sm:$0xff]
    %v1983 = vld [vmem:[%s1976 + $0x30] sm:$0xff]
    %v1984 = vld [vmem:[%s1976 + $0x38] sm:$0xff]
    %v1985 = vld [vmem:[%s1976 + $0x40] sm:$0xff]
    %v1986 = vld [vmem:[%s1976 + $0x48] sm:$0xff]
    %v1987 = vld [vmem:[%s1976 + $0x50] sm:$0xff]
    %v1988 = vld [vmem:[%s1976 + $0x58] sm:$0xff]
    %v1989 = vld [vmem:[%s1976 + $0x60] sm:$0xff]
    %v1990 = vld [vmem:[%s1976 + $0x68] sm:$0xff]
    %v1991 = vld [vmem:[%s1976 + $0x70] sm:$0xff]
    %v1992 = vld [vmem:[%s1976 + $0x78] sm:$0xff]
    %v1993 = vld [vmem:[%s1976 + $0x80] sm:$0xff]
    %v1994 = vld [vmem:[%s1976 + $0x88] sm:$0xff]
    %v1995 = vld [vmem:[%s1976 + $0x90] sm:$0xff]
    %v1996 = vld [vmem:[%s1976 + $0x98] sm:$0xff]
    %v1997 = vld [vmem:[%s1976 + $0xa0] sm:$0xff]
    %v1998 = vld [vmem:[%s1976 + $0xa8] sm:$0xff]
    %v1999 = vld [vmem:[%s1976 + $0xb0] sm:$0xff]
    %v2000 = vld [vmem:[%s1976 + $0xb8] sm:$0xff]
    %v2001 = vld [vmem:[%s1976 + $0xc0] sm:$0xff]
    %v2002 = vld [vmem:[%s1976 + $0xc8] sm:$0xff]
    %v2003 = vld [vmem:[%s1976 + $0xd0] sm:$0xff]
    %v2004 = vld [vmem:[%s1976 + $0xd8] sm:$0xff]
    %v2005 = vld [vmem:[%s1976 + $0xe0] sm:$0xff]
    %v2006 = vld [vmem:[%s1976 + $0xe8] sm:$0xff]
    %v2007 = vld [vmem:[%s1976 + $0xf0] sm:$0xff]
    %v2008 = vld [vmem:[%s1976 + $0xf8] sm:$0xff]
    %v2009 = vld [vmem:[%s1976 + $0x100] sm:$0xff]
    %v2010 = vld [vmem:[%s1976 + $0x108] sm:$0xff]
    %v2011 = vld [vmem:[%s1976 + $0x110] sm:$0xff]
    %v2012 = vld [vmem:[%s1976 + $0x118] sm:$0xff]
    %v2013 = vld [vmem:[%s1976 + $0x120] sm:$0xff]
    %v2014 = vld [vmem:[%s1976 + $0x128] sm:$0xff]
    %v2015 = vld [vmem:[%s1976 + $0x130] sm:$0xff]
    %v2016 = vld [vmem:[%s1976 + $0x138] sm:$0xff]
    %v2017 = vld [vmem:[%s1976 + $0x140] sm:$0xff]
    %v2018 = vld [vmem:[%s1976 + $0x148] sm:$0xff]
    %v2019 = vld [vmem:[%s1976 + $0x150] sm:$0xff]
    %v2020 = vld [vmem:[%s1976 + $0x158] sm:$0xff]
    %v2021 = vld [vmem:[%s1976 + $0x160] sm:$0xff]
    %v2022 = vld [vmem:[%s1976 + $0x168] sm:$0xff]
    %v2023 = vld [vmem:[%s1976 + $0x170] sm:$0xff]
    %v2024 = vld [vmem:[%s1976 + $0x178] sm:$0xff]
    %v2025 = vld [vmem:[%s1976 + $0x180] sm:$0xff]
    %v2026 = vld [vmem:[%s1976 + $0x188] sm:$0xff]
    %v2027 = vld [vmem:[%s1976 + $0x190] sm:$0xff]
    %v2028 = vld [vmem:[%s1976 + $0x198] sm:$0xff]
    %v2029 = vld [vmem:[%s1976 + $0x1a0] sm:$0xff]
    %v2030 = vld [vmem:[%s1976 + $0x1a8] sm:$0xff]
    %v2031 = vld [vmem:[%s1976 + $0x1b0] sm:$0xff]
    %v2032 = vld [vmem:[%s1976 + $0x1b8] sm:$0xff]
    %v2033 = vld [vmem:[%s1976 + $0x1c0] sm:$0xff]
    %v2034 = vld [vmem:[%s1976 + $0x1c8] sm:$0xff]
    %v2035 = vld [vmem:[%s1976 + $0x1d0] sm:$0xff]
    %v2036 = vld [vmem:[%s1976 + $0x1d8] sm:$0xff]
    %v2037 = vld [vmem:[%s1976 + $0x1e0] sm:$0xff]
    %v2038 = vld [vmem:[%s1976 + $0x1e8] sm:$0xff]
    %v2039 = vld [vmem:[%s1976 + $0x1f0] sm:$0xff]
    %v2040 = vld [vmem:[%s1976 + $0x1f8] sm:$0xff]
    %v2041 = vld [vmem:[%s1976 + $0x200] sm:$0xff]
    %v2042 = vld [vmem:[%s1976 + $0x208] sm:$0xff]
    %v2043 = vld [vmem:[%s1976 + $0x210] sm:$0xff]
    %v2044 = vld [vmem:[%s1976 + $0x218] sm:$0xff]
    %v2045 = vld [vmem:[%s1976 + $0x220] sm:$0xff]
    %v2046 = vld [vmem:[%s1976 + $0x228] sm:$0xff]
    %v2047 = vld [vmem:[%s1976 + $0x230] sm:$0xff]
    %v2048 = vld [vmem:[%s1976 + $0x238] sm:$0xff]
    %v2049 = vld [vmem:[%s1976 + $0x240] sm:$0xff]
    %v2050 = vld [vmem:[%s1976 + $0x248] sm:$0xff]
    %v2051 = vld [vmem:[%s1976 + $0x250] sm:$0xff]
    %v2052 = vld [vmem:[%s1976 + $0x258] sm:$0xff]
    %v2053 = vld [vmem:[%s1976 + $0x260] sm:$0xff]
    %v2054 = vld [vmem:[%s1976 + $0x268] sm:$0xff]
    %v2055 = vld [vmem:[%s1976 + $0x270] sm:$0xff]
    %v2056 = vld [vmem:[%s1976 + $0x278] sm:$0xff]
    %v2057 = vld [vmem:[%s1976 + $0x280] sm:$0xff]
    %v2058 = vld [vmem:[%s1976 + $0x288] sm:$0xff]
    %v2059 = vld [vmem:[%s1976 + $0x290] sm:$0xff]
    %v2060 = vld [vmem:[%s1976 + $0x298] sm:$0xff]
    %v2061 = vld [vmem:[%s1976 + $0x2a0] sm:$0xff]
    %v2062 = vld [vmem:[%s1976 + $0x2a8] sm:$0xff]
    %v2063 = vld [vmem:[%s1976 + $0x2b0] sm:$0xff]
    %v2064 = vld [vmem:[%s1976 + $0x2b8] sm:$0xff]
    %v2065 = vld [vmem:[%s1976 + $0x2c0] sm:$0xff]
    %v2066 = vld [vmem:[%s1976 + $0x2c8] sm:$0xff]
    %v2067 = vld [vmem:[%s1976 + $0x2d0] sm:$0xff]
    %v2068 = vld [vmem:[%s1976 + $0x2d8] sm:$0xff]
    %v2069 = vld [vmem:[%s1976 + $0x2e0] sm:$0xff]
    %v2070 = vld [vmem:[%s1976 + $0x2e8] sm:$0xff]
    %v2071 = vld [vmem:[%s1976 + $0x2f0] sm:$0xff]
    %v2072 = vld [vmem:[%s1976 + $0x2f8] sm:$0xff]
    %v2073 = vld [vmem:[%s1976 + $0x300] sm:$0xff]
    %v2074 = vld [vmem:[%s1976 + $0x308] sm:$0xff]
    %v2075 = vld [vmem:[%s1976 + $0x310] sm:$0xff]
    %v2076 = vld [vmem:[%s1976 + $0x318] sm:$0xff]
    %v2077 = vld [vmem:[%s1976 + $0x320] sm:$0xff]
    %v2078 = vld [vmem:[%s1976 + $0x328] sm:$0xff]
    %v2079 = vld [vmem:[%s1976 + $0x330] sm:$0xff]
    %v2080 = vld [vmem:[%s1976 + $0x338] sm:$0xff]
    %v2081 = vld [vmem:[%s1976 + $0x340] sm:$0xff]
    %v2082 = vld [vmem:[%s1976 + $0x348] sm:$0xff]
    %v2083 = vld [vmem:[%s1976 + $0x350] sm:$0xff]
    %v2084 = vld [vmem:[%s1976 + $0x358] sm:$0xff]
    %v2085 = vld [vmem:[%s1976 + $0x360] sm:$0xff]
    %v2086 = vld [vmem:[%s1976 + $0x368] sm:$0xff]
    %v2087 = vld [vmem:[%s1976 + $0x370] sm:$0xff]
    %v2088 = vld [vmem:[%s1976 + $0x378] sm:$0xff]
    %v2089 = vld [vmem:[%s1976 + $0x380] sm:$0xff]
    %v2090 = vld [vmem:[%s1976 + $0x388] sm:$0xff]
    %v2091 = vld [vmem:[%s1976 + $0x390] sm:$0xff]
    %v2092 = vld [vmem:[%s1976 + $0x398] sm:$0xff]
    %v2093 = vld [vmem:[%s1976 + $0x3a0] sm:$0xff]
    %v2094 = vld [vmem:[%s1976 + $0x3a8] sm:$0xff]
    %v2095 = vld [vmem:[%s1976 + $0x3b0] sm:$0xff]
    %v2096 = vld [vmem:[%s1976 + $0x3b8] sm:$0xff]
    %v2097 = vld [vmem:[%s1976 + $0x3c0] sm:$0xff]
    %v2098 = vld [vmem:[%s1976 + $0x3c8] sm:$0xff]
    %v2099 = vld [vmem:[%s1976 + $0x3d0] sm:$0xff]
    %v2100 = vld [vmem:[%s1976 + $0x3d8] sm:$0xff]
    %v2101 = vld [vmem:[%s1976 + $0x3e0] sm:$0xff]
    %v2102 = vld [vmem:[%s1976 + $0x3e8] sm:$0xff]
    %v2103 = vld [vmem:[%s1976 + $0x3f0] sm:$0xff]
    %v2104 = vld [vmem:[%s1976 + $0x3f8] sm:$0xff]
    %v2233 = vunpack.c.l.b16 %v1977
    %v2234 = vunpack.c.h.b16 %v1977
    %v2235 = vunpack.c.l.b16 %v1978
    %v2236 = vunpack.c.h.b16 %v1978
    %v2237 = vunpack.c.l.b16 %v1979
    %v2238 = vunpack.c.h.b16 %v1979
    %v2239 = vunpack.c.l.b16 %v1980
    %v2240 = vunpack.c.h.b16 %v1980
    %v2241 = vunpack.c.l.b16 %v1981
    %v2242 = vunpack.c.h.b16 %v1981
    %v2243 = vunpack.c.l.b16 %v1982
    %v2244 = vunpack.c.h.b16 %v1982
    %v2245 = vunpack.c.l.b16 %v1983
    %v2246 = vunpack.c.h.b16 %v1983
    %v2247 = vunpack.c.l.b16 %v1984
    %v2248 = vunpack.c.h.b16 %v1984
    %v2249 = vunpack.c.l.b16 %v1985
    %v2250 = vunpack.c.h.b16 %v1985
    %v2251 = vunpack.c.l.b16 %v1986
    %v2252 = vunpack.c.h.b16 %v1986
    %v2253 = vunpack.c.l.b16 %v1987
    %v2254 = vunpack.c.h.b16 %v1987
    %v2255 = vunpack.c.l.b16 %v1988
    %v2256 = vunpack.c.h.b16 %v1988
    %v2257 = vunpack.c.l.b16 %v1989
    %v2258 = vunpack.c.h.b16 %v1989
    %v2259 = vunpack.c.l.b16 %v1990
    %v2260 = vunpack.c.h.b16 %v1990
    %v2261 = vunpack.c.l.b16 %v1991
    %v2262 = vunpack.c.h.b16 %v1991
    %v2263 = vunpack.c.l.b16 %v1992
    %v2264 = vunpack.c.h.b16 %v1992
    %v2265 = vunpack.c.l.b16 %v1993
    %v2266 = vunpack.c.h.b16 %v1993
    %v2267 = vunpack.c.l.b16 %v1994
    %v2268 = vunpack.c.h.b16 %v1994
    %v2269 = vunpack.c.l.b16 %v1995
    %v2270 = vunpack.c.h.b16 %v1995
    %v2271 = vunpack.c.l.b16 %v1996
    %v2272 = vunpack.c.h.b16 %v1996
    %v2273 = vunpack.c.l.b16 %v1997
    %v2274 = vunpack.c.h.b16 %v1997
    %v2275 = vunpack.c.l.b16 %v1998
    %v2276 = vunpack.c.h.b16 %v1998
    %v2277 = vunpack.c.l.b16 %v1999
    %v2278 = vunpack.c.h.b16 %v1999
    %v2279 = vunpack.c.l.b16 %v2000
    %v2280 = vunpack.c.h.b16 %v2000
    %v2281 = vunpack.c.l.b16 %v2001
    %v2282 = vunpack.c.h.b16 %v2001
    %v2283 = vunpack.c.l.b16 %v2002
    %v2284 = vunpack.c.h.b16 %v2002
    %v2285 = vunpack.c.l.b16 %v2003
    %v2286 = vunpack.c.h.b16 %v2003
    %v2287 = vunpack.c.l.b16 %v2004
    %v2288 = vunpack.c.h.b16 %v2004
    %v2289 = vunpack.c.l.b16 %v2005
    %v2290 = vunpack.c.h.b16 %v2005
    %v2291 = vunpack.c.l.b16 %v2006
    %v2292 = vunpack.c.h.b16 %v2006
    %v2293 = vunpack.c.l.b16 %v2007
    %v2294 = vunpack.c.h.b16 %v2007
    %v2295 = vunpack.c.l.b16 %v2008
    %v2296 = vunpack.c.h.b16 %v2008
    %v2297 = vunpack.c.l.b16 %v2009
    %v2298 = vunpack.c.h.b16 %v2009
    %v2299 = vunpack.c.l.b16 %v2010
    %v2300 = vunpack.c.h.b16 %v2010
    %v2301 = vunpack.c.l.b16 %v2011
    %v2302 = vunpack.c.h.b16 %v2011
    %v2303 = vunpack.c.l.b16 %v2012
    %v2304 = vunpack.c.h.b16 %v2012
    %v2305 = vunpack.c.l.b16 %v2013
    %v2306 = vunpack.c.h.b16 %v2013
    %v2307 = vunpack.c.l.b16 %v2014
    %v2308 = vunpack.c.h.b16 %v2014
    %v2309 = vunpack.c.l.b16 %v2015
    %v2310 = vunpack.c.h.b16 %v2015
    %v2311 = vunpack.c.l.b16 %v2016
    %v2312 = vunpack.c.h.b16 %v2016
    %v2313 = vunpack.c.l.b16 %v2017
    %v2314 = vunpack.c.h.b16 %v2017
    %v2315 = vunpack.c.l.b16 %v2018
    %v2316 = vunpack.c.h.b16 %v2018
    %v2317 = vunpack.c.l.b16 %v2019
    %v2318 = vunpack.c.h.b16 %v2019
    %v2319 = vunpack.c.l.b16 %v2020
    %v2320 = vunpack.c.h.b16 %v2020
    %v2321 = vunpack.c.l.b16 %v2021
    %v2322 = vunpack.c.h.b16 %v2021
    %v2323 = vunpack.c.l.b16 %v2022
    %v2324 = vunpack.c.h.b16 %v2022
    %v2325 = vunpack.c.l.b16 %v2023
    %v2326 = vunpack.c.h.b16 %v2023
    %v2327 = vunpack.c.l.b16 %v2024
    %v2328 = vunpack.c.h.b16 %v2024
    %v2329 = vunpack.c.l.b16 %v2025
    %v2330 = vunpack.c.h.b16 %v2025
    %v2331 = vunpack.c.l.b16 %v2026
    %v2332 = vunpack.c.h.b16 %v2026
    %v2333 = vunpack.c.l.b16 %v2027
    %v2334 = vunpack.c.h.b16 %v2027
    %v2335 = vunpack.c.l.b16 %v2028
    %v2336 = vunpack.c.h.b16 %v2028
    %v2337 = vunpack.c.l.b16 %v2029
    %v2338 = vunpack.c.h.b16 %v2029
    %v2339 = vunpack.c.l.b16 %v2030
    %v2340 = vunpack.c.h.b16 %v2030
    %v2341 = vunpack.c.l.b16 %v2031
    %v2342 = vunpack.c.h.b16 %v2031
    %v2343 = vunpack.c.l.b16 %v2032
    %v2344 = vunpack.c.h.b16 %v2032
    %v2345 = vunpack.c.l.b16 %v2033
    %v2346 = vunpack.c.h.b16 %v2033
    %v2347 = vunpack.c.l.b16 %v2034
    %v2348 = vunpack.c.h.b16 %v2034
    %v2349 = vunpack.c.l.b16 %v2035
    %v2350 = vunpack.c.h.b16 %v2035
    %v2351 = vunpack.c.l.b16 %v2036
    %v2352 = vunpack.c.h.b16 %v2036
    %v2353 = vunpack.c.l.b16 %v2037
    %v2354 = vunpack.c.h.b16 %v2037
    %v2355 = vunpack.c.l.b16 %v2038
    %v2356 = vunpack.c.h.b16 %v2038
    %v2357 = vunpack.c.l.b16 %v2039
    %v2358 = vunpack.c.h.b16 %v2039
    %v2359 = vunpack.c.l.b16 %v2040
    %v2360 = vunpack.c.h.b16 %v2040
    %v2361 = vunpack.c.l.b16 %v2041
    %v2362 = vunpack.c.h.b16 %v2041
    %v2363 = vunpack.c.l.b16 %v2042
    %v2364 = vunpack.c.h.b16 %v2042
    %v2365 = vunpack.c.l.b16 %v2043
    %v2366 = vunpack.c.h.b16 %v2043
    %v2367 = vunpack.c.l.b16 %v2044
    %v2368 = vunpack.c.h.b16 %v2044
    %v2369 = vunpack.c.l.b16 %v2045
    %v2370 = vunpack.c.h.b16 %v2045
    %v2371 = vunpack.c.l.b16 %v2046
    %v2372 = vunpack.c.h.b16 %v2046
    %v2373 = vunpack.c.l.b16 %v2047
    %v2374 = vunpack.c.h.b16 %v2047
    %v2375 = vunpack.c.l.b16 %v2048
    %v2376 = vunpack.c.h.b16 %v2048
    %v2377 = vunpack.c.l.b16 %v2049
    %v2378 = vunpack.c.h.b16 %v2049
    %v2379 = vunpack.c.l.b16 %v2050
    %v2380 = vunpack.c.h.b16 %v2050
    %v2381 = vunpack.c.l.b16 %v2051
    %v2382 = vunpack.c.h.b16 %v2051
    %v2383 = vunpack.c.l.b16 %v2052
    %v2384 = vunpack.c.h.b16 %v2052
    %v2385 = vunpack.c.l.b16 %v2053
    %v2386 = vunpack.c.h.b16 %v2053
    %v2387 = vunpack.c.l.b16 %v2054
    %v2388 = vunpack.c.h.b16 %v2054
    %v2389 = vunpack.c.l.b16 %v2055
    %v2390 = vunpack.c.h.b16 %v2055
    %v2391 = vunpack.c.l.b16 %v2056
    %v2392 = vunpack.c.h.b16 %v2056
    %v2393 = vunpack.c.l.b16 %v2057
    %v2394 = vunpack.c.h.b16 %v2057
    %v2395 = vunpack.c.l.b16 %v2058
    %v2396 = vunpack.c.h.b16 %v2058
    %v2397 = vunpack.c.l.b16 %v2059
    %v2398 = vunpack.c.h.b16 %v2059
    %v2399 = vunpack.c.l.b16 %v2060
    %v2400 = vunpack.c.h.b16 %v2060
    %v2401 = vunpack.c.l.b16 %v2061
    %v2402 = vunpack.c.h.b16 %v2061
    %v2403 = vunpack.c.l.b16 %v2062
    %v2404 = vunpack.c.h.b16 %v2062
    %v2405 = vunpack.c.l.b16 %v2063
    %v2406 = vunpack.c.h.b16 %v2063
    %v2407 = vunpack.c.l.b16 %v2064
    %v2408 = vunpack.c.h.b16 %v2064
    %v2409 = vunpack.c.l.b16 %v2065
    %v2410 = vunpack.c.h.b16 %v2065
    %v2411 = vunpack.c.l.b16 %v2066
    %v2412 = vunpack.c.h.b16 %v2066
    %v2413 = vunpack.c.l.b16 %v2067
    %v2414 = vunpack.c.h.b16 %v2067
    %v2415 = vunpack.c.l.b16 %v2068
    %v2416 = vunpack.c.h.b16 %v2068
    %v2417 = vunpack.c.l.b16 %v2069
    %v2418 = vunpack.c.h.b16 %v2069
    %v2419 = vunpack.c.l.b16 %v2070
    %v2420 = vunpack.c.h.b16 %v2070
    %v2421 = vunpack.c.l.b16 %v2071
    %v2422 = vunpack.c.h.b16 %v2071
    %v2423 = vunpack.c.l.b16 %v2072
    %v2424 = vunpack.c.h.b16 %v2072
    %v2425 = vunpack.c.l.b16 %v2073
    %v2426 = vunpack.c.h.b16 %v2073
    %v2427 = vunpack.c.l.b16 %v2074
    %v2428 = vunpack.c.h.b16 %v2074
    %v2429 = vunpack.c.l.b16 %v2075
    %v2430 = vunpack.c.h.b16 %v2075
    %v2431 = vunpack.c.l.b16 %v2076
    %v2432 = vunpack.c.h.b16 %v2076
    %v2433 = vunpack.c.l.b16 %v2077
    %v2434 = vunpack.c.h.b16 %v2077
    %v2435 = vunpack.c.l.b16 %v2078
    %v2436 = vunpack.c.h.b16 %v2078
    %v2437 = vunpack.c.l.b16 %v2079
    %v2438 = vunpack.c.h.b16 %v2079
    %v2439 = vunpack.c.l.b16 %v2080
    %v2440 = vunpack.c.h.b16 %v2080
    %v2441 = vunpack.c.l.b16 %v2081
    %v2442 = vunpack.c.h.b16 %v2081
    %v2443 = vunpack.c.l.b16 %v2082
    %v2444 = vunpack.c.h.b16 %v2082
    %v2445 = vunpack.c.l.b16 %v2083
    %v2446 = vunpack.c.h.b16 %v2083
    %v2447 = vunpack.c.l.b16 %v2084
    %v2448 = vunpack.c.h.b16 %v2084
    %v2449 = vunpack.c.l.b16 %v2085
    %v2450 = vunpack.c.h.b16 %v2085
    %v2451 = vunpack.c.l.b16 %v2086
    %v2452 = vunpack.c.h.b16 %v2086
    %v2453 = vunpack.c.l.b16 %v2087
    %v2454 = vunpack.c.h.b16 %v2087
    %v2455 = vunpack.c.l.b16 %v2088
    %v2456 = vunpack.c.h.b16 %v2088
    %v2457 = vunpack.c.l.b16 %v2089
    %v2458 = vunpack.c.h.b16 %v2089
    %v2459 = vunpack.c.l.b16 %v2090
    %v2460 = vunpack.c.h.b16 %v2090
    %v2461 = vunpack.c.l.b16 %v2091
    %v2462 = vunpack.c.h.b16 %v2091
    %v2463 = vunpack.c.l.b16 %v2092
    %v2464 = vunpack.c.h.b16 %v2092
    %v2465 = vunpack.c.l.b16 %v2093
    %v2466 = vunpack.c.h.b16 %v2093
    %v2467 = vunpack.c.l.b16 %v2094
    %v2468 = vunpack.c.h.b16 %v2094
    %v2469 = vunpack.c.l.b16 %v2095
    %v2470 = vunpack.c.h.b16 %v2095
    %v2471 = vunpack.c.l.b16 %v2096
    %v2472 = vunpack.c.h.b16 %v2096
    %v2473 = vunpack.c.l.b16 %v2097
    %v2474 = vunpack.c.h.b16 %v2097
    %v2475 = vunpack.c.l.b16 %v2098
    %v2476 = vunpack.c.h.b16 %v2098
    %v2477 = vunpack.c.l.b16 %v2099
    %v2478 = vunpack.c.h.b16 %v2099
    %v2479 = vunpack.c.l.b16 %v2100
    %v2480 = vunpack.c.h.b16 %v2100
    %v2481 = vunpack.c.l.b16 %v2101
    %v2482 = vunpack.c.h.b16 %v2101
    %v2483 = vunpack.c.l.b16 %v2102
    %v2484 = vunpack.c.h.b16 %v2102
    %v2485 = vunpack.c.l.b16 %v2103
    %v2486 = vunpack.c.h.b16 %v2103
    %v2487 = vunpack.c.l.b16 %v2104
    %v2488 = vunpack.c.h.b16 %v2104
    %v2489 = vpack.c.b16 %v2235, %v2233
    %v2490 = vpack.c.b16 %v2236, %v2234
    %v2491 = vpack.c.b16 %v2239, %v2237
    %v2492 = vpack.c.b16 %v2240, %v2238
    %v2493 = vpack.c.b16 %v2243, %v2241
    %v2494 = vpack.c.b16 %v2244, %v2242
    %v2495 = vpack.c.b16 %v2247, %v2245
    %v2496 = vpack.c.b16 %v2248, %v2246
    %v2497 = vpack.c.b16 %v2251, %v2249
    %v2498 = vpack.c.b16 %v2252, %v2250
    %v2499 = vpack.c.b16 %v2255, %v2253
    %v2500 = vpack.c.b16 %v2256, %v2254
    %v2501 = vpack.c.b16 %v2259, %v2257
    %v2502 = vpack.c.b16 %v2260, %v2258
    %v2503 = vpack.c.b16 %v2263, %v2261
    %v2504 = vpack.c.b16 %v2264, %v2262
    %v2505 = vpack.c.b16 %v2267, %v2265
    %v2506 = vpack.c.b16 %v2268, %v2266
    %v2507 = vpack.c.b16 %v2271, %v2269
    %v2508 = vpack.c.b16 %v2272, %v2270
    %v2509 = vpack.c.b16 %v2275, %v2273
    %v2510 = vpack.c.b16 %v2276, %v2274
    %v2511 = vpack.c.b16 %v2279, %v2277
    %v2512 = vpack.c.b16 %v2280, %v2278
    %v2513 = vpack.c.b16 %v2283, %v2281
    %v2514 = vpack.c.b16 %v2284, %v2282
    %v2515 = vpack.c.b16 %v2287, %v2285
    %v2516 = vpack.c.b16 %v2288, %v2286
    %v2517 = vpack.c.b16 %v2291, %v2289
    %v2518 = vpack.c.b16 %v2292, %v2290
    %v2519 = vpack.c.b16 %v2295, %v2293
    %v2520 = vpack.c.b16 %v2296, %v2294
    %v2521 = vpack.c.b16 %v2299, %v2297
    %v2522 = vpack.c.b16 %v2300, %v2298
    %v2523 = vpack.c.b16 %v2303, %v2301
    %v2524 = vpack.c.b16 %v2304, %v2302
    %v2525 = vpack.c.b16 %v2307, %v2305
    %v2526 = vpack.c.b16 %v2308, %v2306
    %v2527 = vpack.c.b16 %v2311, %v2309
    %v2528 = vpack.c.b16 %v2312, %v2310
    %v2529 = vpack.c.b16 %v2315, %v2313
    %v2530 = vpack.c.b16 %v2316, %v2314
    %v2531 = vpack.c.b16 %v2319, %v2317
    %v2532 = vpack.c.b16 %v2320, %v2318
    %v2533 = vpack.c.b16 %v2323, %v2321
    %v2534 = vpack.c.b16 %v2324, %v2322
    %v2535 = vpack.c.b16 %v2327, %v2325
    %v2536 = vpack.c.b16 %v2328, %v2326
    %v2537 = vpack.c.b16 %v2331, %v2329
    %v2538 = vpack.c.b16 %v2332, %v2330
    %v2539 = vpack.c.b16 %v2335, %v2333
    %v2540 = vpack.c.b16 %v2336, %v2334
    %v2541 = vpack.c.b16 %v2339, %v2337
    %v2542 = vpack.c.b16 %v2340, %v2338
    %v2543 = vpack.c.b16 %v2343, %v2341
    %v2544 = vpack.c.b16 %v2344, %v2342
    %v2545 = vpack.c.b16 %v2347, %v2345
    %v2546 = vpack.c.b16 %v2348, %v2346
    %v2547 = vpack.c.b16 %v2351, %v2349
    %v2548 = vpack.c.b16 %v2352, %v2350
    %v2549 = vpack.c.b16 %v2355, %v2353
    %v2550 = vpack.c.b16 %v2356, %v2354
    %v2551 = vpack.c.b16 %v2359, %v2357
    %v2552 = vpack.c.b16 %v2360, %v2358
    %v2553 = vpack.c.b16 %v2363, %v2361
    %v2554 = vpack.c.b16 %v2364, %v2362
    %v2555 = vpack.c.b16 %v2367, %v2365
    %v2556 = vpack.c.b16 %v2368, %v2366
    %v2557 = vpack.c.b16 %v2371, %v2369
    %v2558 = vpack.c.b16 %v2372, %v2370
    %v2559 = vpack.c.b16 %v2375, %v2373
    %v2560 = vpack.c.b16 %v2376, %v2374
    %v2561 = vpack.c.b16 %v2379, %v2377
    %v2562 = vpack.c.b16 %v2380, %v2378
    %v2563 = vpack.c.b16 %v2383, %v2381
    %v2564 = vpack.c.b16 %v2384, %v2382
    %v2565 = vpack.c.b16 %v2387, %v2385
    %v2566 = vpack.c.b16 %v2388, %v2386
    %v2567 = vpack.c.b16 %v2391, %v2389
    %v2568 = vpack.c.b16 %v2392, %v2390
    %v2569 = vpack.c.b16 %v2395, %v2393
    %v2570 = vpack.c.b16 %v2396, %v2394
    %v2571 = vpack.c.b16 %v2399, %v2397
    %v2572 = vpack.c.b16 %v2400, %v2398
    %v2573 = vpack.c.b16 %v2403, %v2401
    %v2574 = vpack.c.b16 %v2404, %v2402
    %v2575 = vpack.c.b16 %v2407, %v2405
    %v2576 = vpack.c.b16 %v2408, %v2406
    %v2577 = vpack.c.b16 %v2411, %v2409
    %v2578 = vpack.c.b16 %v2412, %v2410
    %v2579 = vpack.c.b16 %v2415, %v2413
    %v2580 = vpack.c.b16 %v2416, %v2414
    %v2581 = vpack.c.b16 %v2419, %v2417
    %v2582 = vpack.c.b16 %v2420, %v2418
    %v2583 = vpack.c.b16 %v2423, %v2421
    %v2584 = vpack.c.b16 %v2424, %v2422
    %v2585 = vpack.c.b16 %v2427, %v2425
    %v2586 = vpack.c.b16 %v2428, %v2426
    %v2587 = vpack.c.b16 %v2431, %v2429
    %v2588 = vpack.c.b16 %v2432, %v2430
    %v2589 = vpack.c.b16 %v2435, %v2433
    %v2590 = vpack.c.b16 %v2436, %v2434
    %v2591 = vpack.c.b16 %v2439, %v2437
    %v2592 = vpack.c.b16 %v2440, %v2438
    %v2593 = vpack.c.b16 %v2443, %v2441
    %v2594 = vpack.c.b16 %v2444, %v2442
    %v2595 = vpack.c.b16 %v2447, %v2445
    %v2596 = vpack.c.b16 %v2448, %v2446
    %v2597 = vpack.c.b16 %v2451, %v2449
    %v2598 = vpack.c.b16 %v2452, %v2450
    %v2599 = vpack.c.b16 %v2455, %v2453
    %v2600 = vpack.c.b16 %v2456, %v2454
    %v2601 = vpack.c.b16 %v2459, %v2457
    %v2602 = vpack.c.b16 %v2460, %v2458
    %v2603 = vpack.c.b16 %v2463, %v2461
    %v2604 = vpack.c.b16 %v2464, %v2462
    %v2605 = vpack.c.b16 %v2467, %v2465
    %v2606 = vpack.c.b16 %v2468, %v2466
    %v2607 = vpack.c.b16 %v2471, %v2469
    %v2608 = vpack.c.b16 %v2472, %v2470
    %v2609 = vpack.c.b16 %v2475, %v2473
    %v2610 = vpack.c.b16 %v2476, %v2474
    %v2611 = vpack.c.b16 %v2479, %v2477
    %v2612 = vpack.c.b16 %v2480, %v2478
    %v2613 = vpack.c.b16 %v2483, %v2481
    %v2614 = vpack.c.b16 %v2484, %v2482
    %v2615 = vpack.c.b16 %v2487, %v2485
    %v2616 = vpack.c.b16 %v2488, %v2486
    %2745 = vmatprep.subr.bf16.mxu0 %v2490
    %2746 = vmatpush1.bf16.msra.mxu0 %v2489
    %2747 = vmatprep.subr.bf16.mxu0 %v2492
    %2748 = vmatpush1.bf16.msra.mxu0 %v2491
    %2749 = vmatprep.subr.bf16.mxu0 %v2494
    %2750 = vmatpush1.bf16.msra.mxu0 %v2493
    %2751 = vmatprep.subr.bf16.mxu0 %v2496
    %2752 = vmatpush1.bf16.msra.mxu0 %v2495
    %2753 = vmatprep.subr.bf16.mxu0 %v2498
    %2754 = vmatpush1.bf16.msra.mxu0 %v2497
    %2755 = vmatprep.subr.bf16.mxu0 %v2500
    %2756 = vmatpush1.bf16.msra.mxu0 %v2499
    %2757 = vmatprep.subr.bf16.mxu0 %v2502
    %2758 = vmatpush1.bf16.msra.mxu0 %v2501
    %2759 = vmatprep.subr.bf16.mxu0 %v2504
    %2760 = vmatpush1.bf16.msra.mxu0 %v2503
    %2761 = vmatprep.subr.bf16.mxu0 %v2506
    %2762 = vmatpush1.bf16.msra.mxu0 %v2505
    %2763 = vmatprep.subr.bf16.mxu0 %v2508
    %2764 = vmatpush1.bf16.msra.mxu0 %v2507
    %2765 = vmatprep.subr.bf16.mxu0 %v2510
    %2766 = vmatpush1.bf16.msra.mxu0 %v2509
    %2767 = vmatprep.subr.bf16.mxu0 %v2512
    %2768 = vmatpush1.bf16.msra.mxu0 %v2511
    %2769 = vmatprep.subr.bf16.mxu0 %v2514
    %2770 = vmatpush1.bf16.msra.mxu0 %v2513
    %2771 = vmatprep.subr.bf16.mxu0 %v2516
    %2772 = vmatpush1.bf16.msra.mxu0 %v2515
    %2773 = vmatprep.subr.bf16.mxu0 %v2518
    %2774 = vmatpush1.bf16.msra.mxu0 %v2517
    %2775 = vmatprep.subr.bf16.mxu0 %v2520
    %2776 = vmatpush1.bf16.msra.mxu0 %v2519
    %2777 = vmatprep.mubr.bf16.mxu0 %v348
    %2778 = vmatmul.mubr.bf16.gmra.mrb[0].mxu0 %v334
    %v2779 = vpop.f32.mrb[0].mxu0
    %v2780 = vadd.f32 0.0, %v2779
    %v2781 = vpop.f32.mrb[0].mxu0
    %v2782 = vadd.f32 0.0, %v2781
    %v2783 = vpop.f32.mrb[0].mxu0
    %v2784 = vpop.f32.mrb[0].mxu0
    %2785 = vdwg.mxu0
    %2786 = vmatprep.subr.bf16.mxu0 %v2522
    %2787 = vmatpush1.bf16.msra.mxu0 %v2521
    %2788 = vmatprep.subr.bf16.mxu0 %v2524
    %2789 = vmatpush1.bf16.msra.mxu0 %v2523
    %2790 = vmatprep.subr.bf16.mxu0 %v2526
    %2791 = vmatpush1.bf16.msra.mxu0 %v2525
    %2792 = vmatprep.subr.bf16.mxu0 %v2528
    %2793 = vmatpush1.bf16.msra.mxu0 %v2527
    %2794 = vmatprep.subr.bf16.mxu0 %v2530
    %2795 = vmatpush1.bf16.msra.mxu0 %v2529
    %2796 = vmatprep.subr.bf16.mxu0 %v2532
    %2797 = vmatpush1.bf16.msra.mxu0 %v2531
    %2798 = vmatprep.subr.bf16.mxu0 %v2534
    %2799 = vmatpush1.bf16.msra.mxu0 %v2533
    %2800 = vmatprep.subr.bf16.mxu0 %v2536
    %2801 = vmatpush1.bf16.msra.mxu0 %v2535
    %2802 = vmatprep.subr.bf16.mxu0 %v2538
    %2803 = vmatpush1.bf16.msra.mxu0 %v2537
    %2804 = vmatprep.subr.bf16.mxu0 %v2540
    %2805 = vmatpush1.bf16.msra.mxu0 %v2539
    %2806 = vmatprep.subr.bf16.mxu0 %v2542
    %2807 = vmatpush1.bf16.msra.mxu0 %v2541
    %2808 = vmatprep.subr.bf16.mxu0 %v2544
    %2809 = vmatpush1.bf16.msra.mxu0 %v2543
    %2810 = vmatprep.subr.bf16.mxu0 %v2546
    %2811 = vmatpush1.bf16.msra.mxu0 %v2545
    %2812 = vmatprep.subr.bf16.mxu0 %v2548
    %2813 = vmatpush1.bf16.msra.mxu0 %v2547
    %2814 = vmatprep.subr.bf16.mxu0 %v2550
    %2815 = vmatpush1.bf16.msra.mxu0 %v2549
    %2816 = vmatprep.subr.bf16.mxu0 %v2552
    %2817 = vmatpush1.bf16.msra.mxu0 %v2551
    %2818 = vmatprep.mubr.bf16.mxu0 %v358
    %2819 = vmatmul.mubr.bf16.gmra.mrb[0].mxu0 %v356
    %v2820 = vpop.f32.mrb[0].mxu0
    %v2821 = vadd.f32 %v2780, %v2820
    %v2822 = vpop.f32.mrb[0].mxu0
    %v2823 = vadd.f32 %v2782, %v2822
    %v2824 = vpop.f32.mrb[0].mxu0
    %v2825 = vpop.f32.mrb[0].mxu0
    %2826 = vdwg.mxu0
    %2827 = vmatprep.subr.bf16.mxu0 %v2554
    %2828 = vmatpush1.bf16.msra.mxu0 %v2553
    %2829 = vmatprep.subr.bf16.mxu0 %v2556
    %2830 = vmatpush1.bf16.msra.mxu0 %v2555
    %2831 = vmatprep.subr.bf16.mxu0 %v2558
    %2832 = vmatpush1.bf16.msra.mxu0 %v2557
    %2833 = vmatprep.subr.bf16.mxu0 %v2560
    %2834 = vmatpush1.bf16.msra.mxu0 %v2559
    %2835 = vmatprep.subr.bf16.mxu0 %v2562
    %2836 = vmatpush1.bf16.msra.mxu0 %v2561
    %2837 = vmatprep.subr.bf16.mxu0 %v2564
    %2838 = vmatpush1.bf16.msra.mxu0 %v2563
    %2839 = vmatprep.subr.bf16.mxu0 %v2566
    %2840 = vmatpush1.bf16.msra.mxu0 %v2565
    %2841 = vmatprep.subr.bf16.mxu0 %v2568
    %2842 = vmatpush1.bf16.msra.mxu0 %v2567
    %2843 = vmatprep.subr.bf16.mxu0 %v2570
    %2844 = vmatpush1.bf16.msra.mxu0 %v2569
    %2845 = vmatprep.subr.bf16.mxu0 %v2572
    %2846 = vmatpush1.bf16.msra.mxu0 %v2571
    %2847 = vmatprep.subr.bf16.mxu0 %v2574
    %2848 = vmatpush1.bf16.msra.mxu0 %v2573
    %2849 = vmatprep.subr.bf16.mxu0 %v2576
    %2850 = vmatpush1.bf16.msra.mxu0 %v2575
    %2851 = vmatprep.subr.bf16.mxu0 %v2578
    %2852 = vmatpush1.bf16.msra.mxu0 %v2577
    %2853 = vmatprep.subr.bf16.mxu0 %v2580
    %2854 = vmatpush1.bf16.msra.mxu0 %v2579
    %2855 = vmatprep.subr.bf16.mxu0 %v2582
    %2856 = vmatpush1.bf16.msra.mxu0 %v2581
    %2857 = vmatprep.subr.bf16.mxu0 %v2584
    %2858 = vmatpush1.bf16.msra.mxu0 %v2583
    %2859 = vmatprep.mubr.bf16.mxu0 %v355
    %2860 = vmatmul.mubr.bf16.gmra.mrb[0].mxu0 %v341
    %v2861 = vpop.f32.mrb[0].mxu0
    %v2862 = vadd.f32 %v2821, %v2861
    %v2863 = vpop.f32.mrb[0].mxu0
    %v2864 = vadd.f32 %v2823, %v2863
    %v2865 = vpop.f32.mrb[0].mxu0
    %v2866 = vpop.f32.mrb[0].mxu0
    %2867 = vdwg.mxu0
    %2868 = vmatprep.subr.bf16.mxu0 %v2586
    %2869 = vmatpush1.bf16.msra.mxu0 %v2585
    %2870 = vmatprep.subr.bf16.mxu0 %v2588
    %2871 = vmatpush1.bf16.msra.mxu0 %v2587
    %2872 = vmatprep.subr.bf16.mxu0 %v2590
    %2873 = vmatpush1.bf16.msra.mxu0 %v2589
    %2874 = vmatprep.subr.bf16.mxu0 %v2592
    %2875 = vmatpush1.bf16.msra.mxu0 %v2591
    %2876 = vmatprep.subr.bf16.mxu0 %v2594
    %2877 = vmatpush1.bf16.msra.mxu0 %v2593
    %2878 = vmatprep.subr.bf16.mxu0 %v2596
    %2879 = vmatpush1.bf16.msra.mxu0 %v2595
    %2880 = vmatprep.subr.bf16.mxu0 %v2598
    %2881 = vmatpush1.bf16.msra.mxu0 %v2597
    %2882 = vmatprep.subr.bf16.mxu0 %v2600
    %2883 = vmatpush1.bf16.msra.mxu0 %v2599
    %2884 = vmatprep.subr.bf16.mxu0 %v2602
    %2885 = vmatpush1.bf16.msra.mxu0 %v2601
    %2886 = vmatprep.subr.bf16.mxu0 %v2604
    %2887 = vmatpush1.bf16.msra.mxu0 %v2603
    %2888 = vmatprep.subr.bf16.mxu0 %v2606
    %2889 = vmatpush1.bf16.msra.mxu0 %v2605
    %2890 = vmatprep.subr.bf16.mxu0 %v2608
    %2891 = vmatpush1.bf16.msra.mxu0 %v2607
    %2892 = vmatprep.subr.bf16.mxu0 %v2610
    %2893 = vmatpush1.bf16.msra.mxu0 %v2609
    %2894 = vmatprep.subr.bf16.mxu0 %v2612
    %2895 = vmatpush1.bf16.msra.mxu0 %v2611
    %2896 = vmatprep.subr.bf16.mxu0 %v2614
    %2897 = vmatpush1.bf16.msra.mxu0 %v2613
    %2898 = vmatprep.subr.bf16.mxu0 %v2616
    %2899 = vmatpush1.bf16.msra.mxu0 %v2615
    %2900 = vmatprep.mubr.bf16.mxu0 %v359
    %2901 = vmatmul.mubr.bf16.gmra.mrb[0].mxu0 %v357
    %v2902 = vpop.f32.mrb[0].mxu0
    %v2903 = vadd.f32 %v2862, %v2902
    %v2904 = vpop.f32.mrb[0].mxu0
    %v2905 = vadd.f32 %v2864, %v2904
    %v2906 = vpop.f32.mrb[0].mxu0
    %v2907 = vpop.f32.mrb[0].mxu0
    %2908 = vdwg.mxu0
    %v2909 = vadd.f32 %v1970, %v2903
    %v2910 = vadd.f32 %v1972, %v2905
    %v2911 = vld [vmem:[#allocation7] sm:$0x3]
    %v2913 = vlaneseq
    %v2914 = vshrl.u32 %v2913, 7
    %v2915 = vsub.s32 0, %v2914
    %v2916 = vrot.slane %v2911, %v2915
    %v2917 = vlaneseq
    %v2918 = vshrl.u32 %v2917, 7
    %v2919 = vsub.s32 1, %v2918
    %v2920 = vrot.slane %v2911, %v2919
    %v2923 = vadd.f32 %v2909, %v2916
    %v2924 = vadd.f32 %v2910, %v2920
    %v2925 = vmul.f32 %v2923, 0.33333334
    %v2926 = vmul.f32 %v2924, 0.33333334
    %v2929 = vcombine.low %v2925, %v2926
    %v2931 = vunpack.c.l.s4 1983009808
    %v2932 = vunpack.c.0.s8 %v2931
    %v2933 = vlaneseq
    %v2934 = vshrl.u32 %v2933, 7
    %v2935 = vsub.s32 %v2932, %v2934
    %v2936 = vrot.slane %v2929, %v2935
    %2938 = vst [vmem:[#allocation8] sm:$0xf] %v2936
    // Predicated region
    $region26: #{tpu_custom_call.1} parent=1 // pred_check
      _
    $region27: #{tpu_custom_call.1} parent=1 // pred_check_branch
      %2940 = sbr.rel (0) target = $region29
    $region28: #{tpu_custom_call.1} parent=1 // pred_region
      %s2942 = ssub.s32 64, 64
      %2943 = vsyncadd [#allocation4], %s2942
      %s2945 = sshll.u32 [#allocation8], 4
      %s2946 = int_to_ptr.vmem [resolvable:$true] %s2945
      %2948 = dma.vmem_to_hbm [thread:$0]  %s2946, 64, %s3, [#allocation4]
    $region29: #{tpu_custom_call.1} parent=1 // pred_fallthru
      _
    // Predicated region
    $region30: #{tpu_custom_call.1} parent=1 // pred_check
      _
    $region31: #{tpu_custom_call.1} parent=1 // pred_check_branch
      %2950 = sbr.rel (0) target = $region33
    $region32: #{tpu_custom_call.1} parent=1 // pred_region
      %2951 = dma.done [#allocation4], 64
    $region33: #{tpu_custom_call.1} parent=1 // pred_fallthru
      _
    %2952 = vsyncpa [#allocation3], 1
    %2953 = vsyncpa [#allocation6], 1
    %2954 = vsyncpa [#allocation4], 1

</llo_original>
